<compile_context>
chip_gen: v5e
topology: v5e:2x2
jax: 0.10.0
libtpu: 0.0.40
codegen_flags: <defaults>
</compile_context>

<pallas_src>
import functools

import numpy as np
import jax
import jax.numpy as jnp
from jax.experimental import pallas as pl
from jax.experimental.pallas import tpu as pltpu


# ----------------------------------------------------------------------------
# Kernel: one batch block -> conv1, conv2, conv2 (each Conv3x3 + GN + SiLU).
# ----------------------------------------------------------------------------
def _double_conv_kernel(x_ref, wdy1_ref, b1_ref, g1_ref, bt1_ref,
                        wdy2_ref, b2_ref, g2_ref, bt2_ref,
                        o_ref, xbuf1, xbuf2,
                        *, Bt, H, W, C1, C2, G, eps):
    # x_ref:    (Bt, H, W*C1)       input, channels packed with W on lanes
    # wdy*_ref: (3, W*Cin, W*C2)    bf16 block-banded weights (dx shift + col pad)
    # b/g/bt:   (1, W*C2)           conv bias / GN gamma / GN beta per lane
    # o_ref:    (Bt, H, W*C2)
    # xbuf1:    (Bt*(H+2), W*C1)    f32 VMEM staging, per-image zero border rows
    # xbuf2:    (Bt*(H+2), W*C2)    f32 VMEM staging, reused by layers 2 and 3
    Hp = H + 2
    M = Bt * Hp - 2                 # matmul M (rows between images are garbage)
    L = W * C2
    n_inv = 1.0 / float(H * W * (C2 // G))

    def group_reduce(s):
        # s: (Bt, L).  Lanes are packed group-interleaved (lane % G == group),
        # so a doubling circular roll-reduce over the stride-G coset sums and
        # broadcasts each GroupNorm group.  XLU-only, direction-independent.
        k = G
        while k < L:
            s = s + pltpu.roll(s, shift=k, axis=1)
            k *= 2
        return s

    def conv_gn_silu(xbuf, wdy_ref, b_lane, gamma_lane, beta_lane):
        # Conv3x3 SAME: three chained MXU matmuls (one per kernel row dy);
        # dx shift and column zero padding are folded into the banded weights;
        # bf16 operands, f32 accumulation.
        acc = (jnp.dot(xbuf[0:M].astype(jnp.bfloat16), wdy_ref[0],
                       preferred_element_type=jnp.float32)
               + jnp.dot(xbuf[1:M + 1].astype(jnp.bfloat16), wdy_ref[1],
                         preferred_element_type=jnp.float32)
               + jnp.dot(xbuf[2:M + 2].astype(jnp.bfloat16), wdy_ref[2],
                         preferred_element_type=jnp.float32)) + b_lane
        # Per-image column sums over valid rows only (garbage rows between
        # stacked images are excluded from stats and outputs).
        col_sum = jnp.concatenate(
            [jnp.sum(acc[b * Hp:b * Hp + H], axis=0, keepdims=True)
             for b in range(Bt)], axis=0)                          # (Bt, L)
        mean = group_reduce(col_sum) * n_inv                       # (Bt, L)
        cens = [acc[b * Hp:b * Hp + H] - mean[b:b + 1] for b in range(Bt)]
        col_ss = jnp.concatenate(
            [jnp.sum(c * c, axis=0, keepdims=True) for c in cens], axis=0)
        var = group_reduce(col_ss) * n_inv
        ag = jax.lax.rsqrt(var + eps) * gamma_lane                 # (Bt, L)
        ys = []
        for b in range(Bt):
            y = cens[b] * ag[b:b + 1] + beta_lane
            ys.append(y * jax.nn.sigmoid(y))                       # SiLU
        return ys

    # (Re)zero only the border rows each step: interiors are fully rewritten,
    # borders provide the implicit SAME row padding and must read as zero.
    zrow1 = jnp.zeros((1, W * C1), jnp.float32)
    zrow2 = jnp.zeros((1, L), jnp.float32)
    for b in range(Bt):
        xbuf1[b * Hp:b * Hp + 1, :] = zrow1
        xbuf1[b * Hp + H + 1:b * Hp + H + 2, :] = zrow1
        xbuf2[b * Hp:b * Hp + 1, :] = zrow2
        xbuf2[b * Hp + H + 1:b * Hp + H + 2, :] = zrow2

    # Layer 1: conv1
    for b in range(Bt):
        xbuf1[b * Hp + 1:b * Hp + 1 + H, :] = x_ref[b]
    ys = conv_gn_silu(xbuf1, wdy1_ref, b1_ref[...], g1_ref[...], bt1_ref[...])

    # Layer 2: conv2
    for b in range(Bt):
        xbuf2[b * Hp + 1:b * Hp + 1 + H, :] = ys[b]
    ys = conv_gn_silu(xbuf2, wdy2_ref, b2_ref[...], g2_ref[...], bt2_ref[...])

    # Layer 3: conv2 applied again (as in the PyTorch forward).
    for b in range(Bt):
        xbuf2[b * Hp + 1:b * Hp + 1 + H, :] = ys[b]
    ys = conv_gn_silu(xbuf2, wdy2_ref, b2_ref[...], g2_ref[...], bt2_ref[...])

    for b in range(Bt):
        o_ref[b] = ys[b]


# ----------------------------------------------------------------------------
# Wrapper: weight / layout preparation + pallas_call.
# ----------------------------------------------------------------------------
def _build_banded_weights(w_hwio, Wsp, in_src, out_src, dtype):
    """(3,3,Cin,Cout) HWIO -> (3, Wsp*Cin, Wsp*Cout) block-banded bf16 weights.

    wdy[dy, u*Cin + ci, wcol*Cout + co] = w[dy, u - wcol + 1, ci, co] when
    |u - wcol| <= 1, else 0 — folds the dx loop and the column zero padding of
    a SAME 3x3 conv into one matmul per kernel row.  in_src / out_src apply
    the group-interleaved channel permutation used for the lane layout.
    """
    w = w_hwio
    if in_src is not None:
        w = w[:, :, in_src, :]
    if out_src is not None:
        w = w[:, :, :, out_src]
    _, _, Cin, Cout = w.shape
    u = np.arange(Wsp)[:, None]
    wc = np.arange(Wsp)[None, :]
    dx = u - wc + 1                                        # (Wsp, Wsp)
    valid = (dx >= 0) & (dx <= 2)
    dx_c = np.clip(dx, 0, 2)
    wd = w[:, dx_c]                                        # (3, Wsp, Wsp, Cin, Cout)
    wd = wd * jnp.asarray(valid[None, :, :, None, None], w.dtype)
    wd = jnp.transpose(wd, (0, 1, 3, 2, 4))                # (3, Wsp, Cin, Wsp, Cout)
    return wd.reshape(3, Wsp * Cin, Wsp * Cout).astype(dtype)


def double_conv(x_nchw, params, *, groups=4, eps=1e-5, batch_block=None,
                compute_dtype=jnp.bfloat16):
    """Matches DoubleConv.forward: x = conv1(x); x = conv2(x); x = conv2(x)."""
    B, C1, H, W = x_nchw.shape
    w1, b1, g1, bt1 = params["conv1"]
    w2, b2, g2, bt2 = params["conv2"]
    C2 = w1.shape[-1]
    assert C2 % groups == 0
    cg = C2 // groups
    L = W * C2
    assert (L // groups) & (L // groups - 1) == 0, \
        "W*C2/groups must be a power of two for the roll-reduce GroupNorm"

    Bt = B if batch_block is None else batch_block
    assert B % Bt == 0
    # TODO(synk): on v7x (2 TensorCores) pass batch_block=B//2 (or split H and
    # merge partial GN stats) so both cores stay busy when B // Bt == 1.
    # TODO(synk): for W*C2 >> 128 at real UNet resolutions, tile the W axis so
    # each tile loads only its 3 neighbouring weight bands (wdy is O(W^2*C^2)),
    # set vmem_limit_bytes explicitly and single-buffer the weight blocks.

    # Group-interleaved output-channel permutation: packed slot c' holds the
    # original channel src[c'], so that lane % groups == GroupNorm group id.
    src = (np.arange(C2) % groups) * cg + (np.arange(C2) // groups)
    inv = np.empty_like(src)
    inv[src] = np.arange(C2)                               # inverse permutation

    # NCHW -> (B, H, W*C1): channels packed innermost with W on the lane axis.
    x = jnp.transpose(x_nchw, (0, 2, 3, 1)).reshape(B, H, W * C1)

    wdy1 = _build_banded_weights(w1, W, None, src, compute_dtype)  # (3, W*C1, L)
    wdy2 = _build_banded_weights(w2, W, src, src, compute_dtype)   # (3, L, L)

    def lanes(v):                                          # (C2,) -> (1, L)
        return jnp.tile(v[src], W).reshape(1, L).astype(jnp.float32)

    b1l, g1l, bt1l = lanes(b1), lanes(g1), lanes(bt1)
    b2l, g2l, bt2l = lanes(b2), lanes(g2), lanes(bt2)

    kernel = functools.partial(_double_conv_kernel, Bt=Bt, H=H, W=W,
                               C1=C1, C2=C2, G=groups, eps=eps)

    const2 = lambda i: (0, 0)
    const3 = lambda i: (0, 0, 0)

    out = pl.pallas_call(
        kernel,
        out_shape=jax.ShapeDtypeStruct((B, H, L), jnp.float32),
        grid_spec=pltpu.PrefetchScalarGridSpec(
            num_scalar_prefetch=0,
            grid=(B // Bt,),
            in_specs=[
                pl.BlockSpec((Bt, H, W * C1), lambda i: (i, 0, 0)),
                pl.BlockSpec((3, W * C1, L), const3),
                pl.BlockSpec((1, L), const2),
                pl.BlockSpec((1, L), const2),
                pl.BlockSpec((1, L), const2),
                pl.BlockSpec((3, L, L), const3),
                pl.BlockSpec((1, L), const2),
                pl.BlockSpec((1, L), const2),
                pl.BlockSpec((1, L), const2),
            ],
            out_specs=pl.BlockSpec((Bt, H, L), lambda i: (i, 0, 0)),
            scratch_shapes=[
                pltpu.VMEM((Bt * (H + 2), W * C1), jnp.float32),
                pltpu.VMEM((Bt * (H + 2), L), jnp.float32),
            ],
        ),
        compiler_params=pltpu.CompilerParams(
            dimension_semantics=("parallel",)),
    )(x, wdy1, b1l, g1l, bt1l, wdy2, b2l, g2l, bt2l)

    out = out.reshape(B, H, W, C2)
    out = jnp.take(out, jnp.asarray(inv), axis=-1)         # undo channel interleave
    return jnp.transpose(out, (0, 3, 1, 2))                # -> NCHW


# ----------------------------------------------------------------------------
# Plain-JAX f32 reference for verification.
# ----------------------------------------------------------------------------
def _ref_layer(x_nhwc, w, b, gamma, beta, groups=4, eps=1e-5):
    y = jax.lax.conv_general_dilated(
        x_nhwc, w, window_strides=(1, 1), padding="SAME",
        dimension_numbers=("NHWC", "HWIO", "NHWC")) + b
    B, H, W, C = y.shape
    yg = y.reshape(B, H, W, groups, C // groups)
    mean = jnp.mean(yg, axis=(1, 2, 4), keepdims=True)
    var = jnp.mean((yg - mean) ** 2, axis=(1, 2, 4), keepdims=True)
    yn = ((yg - mean) * jax.lax.rsqrt(var + eps)).reshape(B, H, W, C)
    yn = yn * gamma + beta
    return yn * jax.nn.sigmoid(yn)


def _ref_double_conv(x_nchw, params):
    x = jnp.transpose(x_nchw, (0, 2, 3, 1))
    x = _ref_layer(x, *params["conv1"])
    x = _ref_layer(x, *params["conv2"])
    x = _ref_layer(x, *params["conv2"])
    return jnp.transpose(x, (0, 3, 1, 2))


def init_params(key, in_c, out_c):
    k = jax.random.split(key, 4)
    def layer(kw, kb, cin, cout):
        w = 0.1 * jax.random.normal(kw, (3, 3, cin, cout), jnp.float32)
        b = 0.05 * jax.random.normal(kb, (cout,), jnp.float32)
        gamma = jnp.ones((cout,), jnp.float32)
        beta = jnp.zeros((cout,), jnp.float32)
        return (w, b, gamma, beta)
    return {
        "conv1": layer(k[0], k[1], in_c, out_c),
        "conv2": layer(k[2], k[3], out_c, out_c),
    }


if __name__ == "__main__":
    key = jax.random.PRNGKey(0)
    kx, kp = jax.random.split(key)

    B, in_c, out_c, H, W = 2, 4, 8, 16, 16        # out_c divisible by 4 (GroupNorm)
    x = jax.random.normal(kx, (B, in_c, H, W), jnp.float32)   # NCHW like PyTorch
    params = init_params(kp, in_c, out_c)

    out = jax.block_until_ready(double_conv(x, params))
    ref = jax.block_until_ready(_ref_double_conv(x, params))

    assert out.shape == (B, out_c, H, W)
    max_err = float(jnp.max(jnp.abs(out - ref)))
    # bf16 MXU operands (f32 accumulation / GN stats) vs. the f32 reference.
    assert jnp.allclose(out, ref, atol=5e-2, rtol=5e-2), \
        f"mismatch vs reference (max abs err {max_err})"
    print("KERNEL_OK")
</pallas_src>

<mosaic_0001>
module attributes {stable_mosaic.version = 11 : i64} {
  func.func @_double_conv_kernel(%arg0: i32, %arg1: memref<2x16x64xf32, #tpu.memory_space<vmem>>, %arg2: memref<3x64x128xbf16, #tpu.memory_space<vmem>>, %arg3: memref<1x128xf32, #tpu.memory_space<vmem>>, %arg4: memref<1x128xf32, #tpu.memory_space<vmem>>, %arg5: memref<1x128xf32, #tpu.memory_space<vmem>>, %arg6: memref<3x128x128xbf16, #tpu.memory_space<vmem>>, %arg7: memref<1x128xf32, #tpu.memory_space<vmem>>, %arg8: memref<1x128xf32, #tpu.memory_space<vmem>>, %arg9: memref<1x128xf32, #tpu.memory_space<vmem>>, %arg10: memref<2x16x128xf32, #tpu.memory_space<vmem>>, %arg11: memref<36x64xf32, #tpu.memory_space<vmem>>, %arg12: memref<36x128xf32, #tpu.memory_space<vmem>>) attributes {dimension_semantics = [#tpu.dimension_semantics<parallel>], iteration_bounds = array<i64: 1>, scalar_prefetch = 0 : i64, scratch_operands = 2 : i64, tpu.core_type = #tpu.core_type<tc>, window_params = [{transform_indices = @transform_0, window_bounds = array<i64: 2, 16, 64>}, {pipeline_mode = #tpu.pipeline_mode<synchronous>, transform_indices = @transform_1, window_bounds = array<i64: 3, 64, 128>}, {pipeline_mode = #tpu.pipeline_mode<synchronous>, transform_indices = @transform_2, window_bounds = array<i64: 1, 128>}, {pipeline_mode = #tpu.pipeline_mode<synchronous>, transform_indices = @transform_3, window_bounds = array<i64: 1, 128>}, {pipeline_mode = #tpu.pipeline_mode<synchronous>, transform_indices = @transform_4, window_bounds = array<i64: 1, 128>}, {pipeline_mode = #tpu.pipeline_mode<synchronous>, transform_indices = @transform_5, window_bounds = array<i64: 3, 128, 128>}, {pipeline_mode = #tpu.pipeline_mode<synchronous>, transform_indices = @transform_6, window_bounds = array<i64: 1, 128>}, {pipeline_mode = #tpu.pipeline_mode<synchronous>, transform_indices = @transform_7, window_bounds = array<i64: 1, 128>}, {pipeline_mode = #tpu.pipeline_mode<synchronous>, transform_indices = @transform_8, window_bounds = array<i64: 1, 128>}, {transform_indices = @transform_9, window_bounds = array<i64: 2, 16, 128>}]} {
    %cst = arith.constant 0.000000e+00 : f32
    %0 = vector.broadcast %cst : f32 to vector<1x64xf32>
    %cst_0 = arith.constant 0.000000e+00 : f32
    %1 = vector.broadcast %cst_0 : f32 to vector<1x128xf32>
    %c0 = arith.constant 0 : index
    %c0_1 = arith.constant 0 : index
    %2 = vector.load %arg11[%c0, %c0_1] : memref<36x64xf32, #tpu.memory_space<vmem>>, vector<1x64xf32>
    tpu.vector_store %arg11[%c0, %c0_1], %0 {strides = array<i32>} : memref<36x64xf32, #tpu.memory_space<vmem>>, vector<1x64xf32>,
    %c17 = arith.constant 17 : index
    %c0_2 = arith.constant 0 : index
    %3 = vector.load %arg11[%c17, %c0_2] : memref<36x64xf32, #tpu.memory_space<vmem>>, vector<1x64xf32>
    tpu.vector_store %arg11[%c17, %c0_2], %0 {strides = array<i32>} : memref<36x64xf32, #tpu.memory_space<vmem>>, vector<1x64xf32>,
    %c0_3 = arith.constant 0 : index
    %c0_4 = arith.constant 0 : index
    %4 = vector.load %arg12[%c0_3, %c0_4] : memref<36x128xf32, #tpu.memory_space<vmem>>, vector<1x128xf32>
    tpu.vector_store %arg12[%c0_3, %c0_4], %1 {strides = array<i32>} : memref<36x128xf32, #tpu.memory_space<vmem>>, vector<1x128xf32>,
    %c17_5 = arith.constant 17 : index
    %c0_6 = arith.constant 0 : index
    %5 = vector.load %arg12[%c17_5, %c0_6] : memref<36x128xf32, #tpu.memory_space<vmem>>, vector<1x128xf32>
    tpu.vector_store %arg12[%c17_5, %c0_6], %1 {strides = array<i32>} : memref<36x128xf32, #tpu.memory_space<vmem>>, vector<1x128xf32>,
    %c18 = arith.constant 18 : index
    %c0_7 = arith.constant 0 : index
    %6 = vector.load %arg11[%c18, %c0_7] : memref<36x64xf32, #tpu.memory_space<vmem>>, vector<1x64xf32>
    tpu.vector_store %arg11[%c18, %c0_7], %0 {strides = array<i32>} : memref<36x64xf32, #tpu.memory_space<vmem>>, vector<1x64xf32>,
    %c35 = arith.constant 35 : index
    %c0_8 = arith.constant 0 : index
    %7 = vector.load %arg11[%c35, %c0_8] : memref<36x64xf32, #tpu.memory_space<vmem>>, vector<1x64xf32>
    tpu.vector_store %arg11[%c35, %c0_8], %0 {strides = array<i32>} : memref<36x64xf32, #tpu.memory_space<vmem>>, vector<1x64xf32>,
    %c18_9 = arith.constant 18 : index
    %c0_10 = arith.constant 0 : index
    %8 = vector.load %arg12[%c18_9, %c0_10] : memref<36x128xf32, #tpu.memory_space<vmem>>, vector<1x128xf32>
    tpu.vector_store %arg12[%c18_9, %c0_10], %1 {strides = array<i32>} : memref<36x128xf32, #tpu.memory_space<vmem>>, vector<1x128xf32>,
    %c35_11 = arith.constant 35 : index
    %c0_12 = arith.constant 0 : index
    %9 = vector.load %arg12[%c35_11, %c0_12] : memref<36x128xf32, #tpu.memory_space<vmem>>, vector<1x128xf32>
    tpu.vector_store %arg12[%c35_11, %c0_12], %1 {strides = array<i32>} : memref<36x128xf32, #tpu.memory_space<vmem>>, vector<1x128xf32>,
    %c0_13 = arith.constant 0 : index
    %c0_14 = arith.constant 0 : index
    %c0_15 = arith.constant 0 : index
    %10 = vector.load %arg1[%c0_13, %c0_14, %c0_15] : memref<2x16x64xf32, #tpu.memory_space<vmem>>, vector<1x16x64xf32>
    %11 = vector.shape_cast %10 : vector<1x16x64xf32> to vector<16x64xf32>
    %c1 = arith.constant 1 : index
    %c0_16 = arith.constant 0 : index
    %12 = vector.load %arg11[%c1, %c0_16] : memref<36x64xf32, #tpu.memory_space<vmem>>, vector<16x64xf32>
    tpu.vector_store %arg11[%c1, %c0_16], %11 {strides = array<i32>} : memref<36x64xf32, #tpu.memory_space<vmem>>, vector<16x64xf32>,
    %c1_17 = arith.constant 1 : index
    %c0_18 = arith.constant 0 : index
    %c0_19 = arith.constant 0 : index
    %13 = vector.load %arg1[%c1_17, %c0_18, %c0_19] : memref<2x16x64xf32, #tpu.memory_space<vmem>>, vector<1x16x64xf32>
    %14 = vector.shape_cast %13 : vector<1x16x64xf32> to vector<16x64xf32>
    %c19 = arith.constant 19 : index
    %c0_20 = arith.constant 0 : index
    %15 = vector.load %arg11[%c19, %c0_20] : memref<36x64xf32, #tpu.memory_space<vmem>>, vector<16x64xf32>
    tpu.vector_store %arg11[%c19, %c0_20], %14 {strides = array<i32>} : memref<36x64xf32, #tpu.memory_space<vmem>>, vector<16x64xf32>,
    %c0_21 = arith.constant 0 : index
    %c0_22 = arith.constant 0 : index
    %16 = vector.load %arg3[%c0_21, %c0_22] : memref<1x128xf32, #tpu.memory_space<vmem>>, vector<1x128xf32>
    %c0_23 = arith.constant 0 : index
    %c0_24 = arith.constant 0 : index
    %17 = vector.load %arg4[%c0_23, %c0_24] : memref<1x128xf32, #tpu.memory_space<vmem>>, vector<1x128xf32>
    %c0_25 = arith.constant 0 : index
    %c0_26 = arith.constant 0 : index
    %18 = vector.load %arg5[%c0_25, %c0_26] : memref<1x128xf32, #tpu.memory_space<vmem>>, vector<1x128xf32>
    %c0_27 = arith.constant 0 : index
    %c0_28 = arith.constant 0 : index
    %19 = vector.load %arg11[%c0_27, %c0_28] : memref<36x64xf32, #tpu.memory_space<vmem>>, vector<34x64xf32>
    %20 = arith.truncf %19 : vector<34x64xf32> to vector<34x64xbf16>
    %c0_29 = arith.constant 0 : index
    %c0_30 = arith.constant 0 : index
    %c0_31 = arith.constant 0 : index
    %21 = vector.load %arg2[%c0_29, %c0_30, %c0_31] : memref<3x64x128xbf16, #tpu.memory_space<vmem>>, vector<1x64x128xbf16>
    %22 = vector.shape_cast %21 : vector<1x64x128xbf16> to vector<64x128xbf16>
    %cst_32 = arith.constant dense<0.000000e+00> : vector<34x128xf32>
    %23 = tpu.matmul %20, %22, %cst_32 {dimension_numbers = #tpu.dot_dimension_numbers<[1], [0], [0], [1], [0, 0, 1, 1], [], []>} : vector<34x64xbf16>, vector<64x128xbf16>, vector<34x128xf32> -> vector<34x128xf32>
    %c1_33 = arith.constant 1 : index
    %c0_34 = arith.constant 0 : index
    %24 = vector.load %arg11[%c1_33, %c0_34] : memref<36x64xf32, #tpu.memory_space<vmem>>, vector<34x64xf32>
    %25 = arith.truncf %24 : vector<34x64xf32> to vector<34x64xbf16>
    %c1_35 = arith.constant 1 : index
    %c0_36 = arith.constant 0 : index
    %c0_37 = arith.constant 0 : index
    %26 = vector.load %arg2[%c1_35, %c0_36, %c0_37] : memref<3x64x128xbf16, #tpu.memory_space<vmem>>, vector<1x64x128xbf16>
    %27 = vector.shape_cast %26 : vector<1x64x128xbf16> to vector<64x128xbf16>
    %cst_38 = arith.constant dense<0.000000e+00> : vector<34x128xf32>
    %28 = tpu.matmul %25, %27, %cst_38 {dimension_numbers = #tpu.dot_dimension_numbers<[1], [0], [0], [1], [0, 0, 1, 1], [], []>} : vector<34x64xbf16>, vector<64x128xbf16>, vector<34x128xf32> -> vector<34x128xf32>
    %29 = arith.addf %23, %28 : vector<34x128xf32>
    %c2 = arith.constant 2 : index
    %c0_39 = arith.constant 0 : index
    %30 = vector.load %arg11[%c2, %c0_39] : memref<36x64xf32, #tpu.memory_space<vmem>>, vector<34x64xf32>
    %31 = arith.truncf %30 : vector<34x64xf32> to vector<34x64xbf16>
    %c2_40 = arith.constant 2 : index
    %c0_41 = arith.constant 0 : index
    %c0_42 = arith.constant 0 : index
    %32 = vector.load %arg2[%c2_40, %c0_41, %c0_42] : memref<3x64x128xbf16, #tpu.memory_space<vmem>>, vector<1x64x128xbf16>
    %33 = vector.shape_cast %32 : vector<1x64x128xbf16> to vector<64x128xbf16>
    %cst_43 = arith.constant dense<0.000000e+00> : vector<34x128xf32>
    %34 = tpu.matmul %31, %33, %cst_43 {dimension_numbers = #tpu.dot_dimension_numbers<[1], [0], [0], [1], [0, 0, 1, 1], [], []>} : vector<34x64xbf16>, vector<64x128xbf16>, vector<34x128xf32> -> vector<34x128xf32>
    %35 = arith.addf %29, %34 : vector<34x128xf32>
    %36 = vector.broadcast %16 : vector<1x128xf32> to vector<34x128xf32>
    %37 = arith.addf %35, %36 : vector<34x128xf32>
    %38 = vector.extract_strided_slice %37 {offsets = [0, 0], sizes = [16, 128], strides = [1, 1]} : vector<34x128xf32> to vector<16x128xf32>
    %cst_44 = arith.constant dense<0.000000e+00> : vector<128xf32>
    %39 = vector.multi_reduction <add>, %38, %cst_44 [0] : vector<16x128xf32> to vector<128xf32>
    %40 = vector.shape_cast %39 : vector<128xf32> to vector<1x128xf32>
    %41 = vector.extract_strided_slice %37 {offsets = [18, 0], sizes = [16, 128], strides = [1, 1]} : vector<34x128xf32> to vector<16x128xf32>
    %cst_45 = arith.constant dense<0.000000e+00> : vector<128xf32>
    %42 = vector.multi_reduction <add>, %41, %cst_45 [0] : vector<16x128xf32> to vector<128xf32>
    %43 = vector.shape_cast %42 : vector<128xf32> to vector<1x128xf32>
    %44 = tpu.concatenate %40, %43 in 0 : vector<1x128xf32>, vector<1x128xf32> -> vector<2x128xf32>
    %c4_i32 = arith.constant 4 : i32
    %45 = tpu.dynamic_rotate %44 by %c4_i32 dim 1 : vector<2x128xf32>, i32 -> vector<2x128xf32>
    %46 = arith.addf %44, %45 : vector<2x128xf32>
    %c8_i32 = arith.constant 8 : i32
    %47 = tpu.dynamic_rotate %46 by %c8_i32 dim 1 : vector<2x128xf32>, i32 -> vector<2x128xf32>
    %48 = arith.addf %46, %47 : vector<2x128xf32>
    %c16_i32 = arith.constant 16 : i32
    %49 = tpu.dynamic_rotate %48 by %c16_i32 dim 1 : vector<2x128xf32>, i32 -> vector<2x128xf32>
    %50 = arith.addf %48, %49 : vector<2x128xf32>
    %c32_i32 = arith.constant 32 : i32
    %51 = tpu.dynamic_rotate %50 by %c32_i32 dim 1 : vector<2x128xf32>, i32 -> vector<2x128xf32>
    %52 = arith.addf %50, %51 : vector<2x128xf32>
    %c64_i32 = arith.constant 64 : i32
    %53 = tpu.dynamic_rotate %52 by %c64_i32 dim 1 : vector<2x128xf32>, i32 -> vector<2x128xf32>
    %54 = arith.addf %52, %53 : vector<2x128xf32>
    %cst_46 = arith.constant 0.001953125 : f32
    %55 = vector.broadcast %cst_46 : f32 to vector<2x128xf32>
    %56 = arith.mulf %54, %55 : vector<2x128xf32>
    %57 = vector.extract_strided_slice %37 {offsets = [0, 0], sizes = [16, 128], strides = [1, 1]} : vector<34x128xf32> to vector<16x128xf32>
    %58 = vector.extract_strided_slice %56 {offsets = [0, 0], sizes = [1, 128], strides = [1, 1]} : vector<2x128xf32> to vector<1x128xf32>
    %59 = vector.broadcast %58 : vector<1x128xf32> to vector<16x128xf32>
    %60 = arith.subf %57, %59 : vector<16x128xf32>
    %61 = vector.extract_strided_slice %37 {offsets = [18, 0], sizes = [16, 128], strides = [1, 1]} : vector<34x128xf32> to vector<16x128xf32>
    %62 = vector.extract_strided_slice %56 {offsets = [1, 0], sizes = [1, 128], strides = [1, 1]} : vector<2x128xf32> to vector<1x128xf32>
    %63 = vector.broadcast %62 : vector<1x128xf32> to vector<16x128xf32>
    %64 = arith.subf %61, %63 : vector<16x128xf32>
    %65 = arith.mulf %60, %60 : vector<16x128xf32>
    %cst_47 = arith.constant dense<0.000000e+00> : vector<128xf32>
    %66 = vector.multi_reduction <add>, %65, %cst_47 [0] : vector<16x128xf32> to vector<128xf32>
    %67 = vector.shape_cast %66 : vector<128xf32> to vector<1x128xf32>
    %68 = arith.mulf %64, %64 : vector<16x128xf32>
    %cst_48 = arith.constant dense<0.000000e+00> : vector<128xf32>
    %69 = vector.multi_reduction <add>, %68, %cst_48 [0] : vector<16x128xf32> to vector<128xf32>
    %70 = vector.shape_cast %69 : vector<128xf32> to vector<1x128xf32>
    %71 = tpu.concatenate %67, %70 in 0 : vector<1x128xf32>, vector<1x128xf32> -> vector<2x128xf32>
    %c4_i32_49 = arith.constant 4 : i32
    %72 = tpu.dynamic_rotate %71 by %c4_i32_49 dim 1 : vector<2x128xf32>, i32 -> vector<2x128xf32>
    %73 = arith.addf %71, %72 : vector<2x128xf32>
    %c8_i32_50 = arith.constant 8 : i32
    %74 = tpu.dynamic_rotate %73 by %c8_i32_50 dim 1 : vector<2x128xf32>, i32 -> vector<2x128xf32>
    %75 = arith.addf %73, %74 : vector<2x128xf32>
    %c16_i32_51 = arith.constant 16 : i32
    %76 = tpu.dynamic_rotate %75 by %c16_i32_51 dim 1 : vector<2x128xf32>, i32 -> vector<2x128xf32>
    %77 = arith.addf %75, %76 : vector<2x128xf32>
    %c32_i32_52 = arith.constant 32 : i32
    %78 = tpu.dynamic_rotate %77 by %c32_i32_52 dim 1 : vector<2x128xf32>, i32 -> vector<2x128xf32>
    %79 = arith.addf %77, %78 : vector<2x128xf32>
    %c64_i32_53 = arith.constant 64 : i32
    %80 = tpu.dynamic_rotate %79 by %c64_i32_53 dim 1 : vector<2x128xf32>, i32 -> vector<2x128xf32>
    %81 = arith.addf %79, %80 : vector<2x128xf32>
    %cst_54 = arith.constant 0.001953125 : f32
    %82 = vector.broadcast %cst_54 : f32 to vector<2x128xf32>
    %83 = arith.mulf %81, %82 : vector<2x128xf32>
    %cst_55 = arith.constant 9.99999974E-6 : f32
    %84 = vector.broadcast %cst_55 : f32 to vector<2x128xf32>
    %85 = arith.addf %83, %84 : vector<2x128xf32>
    %86 = math.rsqrt %85 : vector<2x128xf32>
    %87 = vector.broadcast %17 : vector<1x128xf32> to vector<2x128xf32>
    %88 = arith.mulf %86, %87 : vector<2x128xf32>
    %89 = vector.extract_strided_slice %88 {offsets = [0, 0], sizes = [1, 128], strides = [1, 1]} : vector<2x128xf32> to vector<1x128xf32>
    %90 = vector.broadcast %89 : vector<1x128xf32> to vector<16x128xf32>
    %91 = arith.mulf %60, %90 : vector<16x128xf32>
    %92 = vector.broadcast %18 : vector<1x128xf32> to vector<16x128xf32>
    %93 = arith.addf %91, %92 : vector<16x128xf32>
    %94 = arith.negf %93 : vector<16x128xf32>
    %95 = math.exp %94 : vector<16x128xf32>
    %cst_56 = arith.constant 1.000000e+00 : f32
    %96 = vector.broadcast %cst_56 : f32 to vector<16x128xf32>
    %97 = arith.addf %96, %95 : vector<16x128xf32>
    %98 = arith.divf %96, %97 : vector<16x128xf32>
    %99 = arith.mulf %93, %98 : vector<16x128xf32>
    %100 = vector.extract_strided_slice %88 {offsets = [1, 0], sizes = [1, 128], strides = [1, 1]} : vector<2x128xf32> to vector<1x128xf32>
    %101 = vector.broadcast %100 : vector<1x128xf32> to vector<16x128xf32>
    %102 = arith.mulf %64, %101 : vector<16x128xf32>
    %103 = vector.broadcast %18 : vector<1x128xf32> to vector<16x128xf32>
    %104 = arith.addf %102, %103 : vector<16x128xf32>
    %105 = arith.negf %104 : vector<16x128xf32>
    %106 = math.exp %105 : vector<16x128xf32>
    %cst_57 = arith.constant 1.000000e+00 : f32
    %107 = vector.broadcast %cst_57 : f32 to vector<16x128xf32>
    %108 = arith.addf %107, %106 : vector<16x128xf32>
    %109 = arith.divf %107, %108 : vector<16x128xf32>
    %110 = arith.mulf %104, %109 : vector<16x128xf32>
    %c1_58 = arith.constant 1 : index
    %c0_59 = arith.constant 0 : index
    %111 = vector.load %arg12[%c1_58, %c0_59] : memref<36x128xf32, #tpu.memory_space<vmem>>, vector<16x128xf32>
    tpu.vector_store %arg12[%c1_58, %c0_59], %99 {strides = array<i32>} : memref<36x128xf32, #tpu.memory_space<vmem>>, vector<16x128xf32>,
    %c19_60 = arith.constant 19 : index
    %c0_61 = arith.constant 0 : index
    %112 = vector.load %arg12[%c19_60, %c0_61] : memref<36x128xf32, #tpu.memory_space<vmem>>, vector<16x128xf32>
    tpu.vector_store %arg12[%c19_60, %c0_61], %110 {strides = array<i32>} : memref<36x128xf32, #tpu.memory_space<vmem>>, vector<16x128xf32>,
    %c0_62 = arith.constant 0 : index
    %c0_63 = arith.constant 0 : index
    %113 = vector.load %arg7[%c0_62, %c0_63] : memref<1x128xf32, #tpu.memory_space<vmem>>, vector<1x128xf32>
    %c0_64 = arith.constant 0 : index
    %c0_65 = arith.constant 0 : index
    %114 = vector.load %arg8[%c0_64, %c0_65] : memref<1x128xf32, #tpu.memory_space<vmem>>, vector<1x128xf32>
    %c0_66 = arith.constant 0 : index
    %c0_67 = arith.constant 0 : index
    %115 = vector.load %arg9[%c0_66, %c0_67] : memref<1x128xf32, #tpu.memory_space<vmem>>, vector<1x128xf32>
    %c0_68 = arith.constant 0 : index
    %c0_69 = arith.constant 0 : index
    %116 = vector.load %arg12[%c0_68, %c0_69] : memref<36x128xf32, #tpu.memory_space<vmem>>, vector<34x128xf32>
    %117 = arith.truncf %116 : vector<34x128xf32> to vector<34x128xbf16>
    %c0_70 = arith.constant 0 : index
    %c0_71 = arith.constant 0 : index
    %c0_72 = arith.constant 0 : index
    %118 = vector.load %arg6[%c0_70, %c0_71, %c0_72] : memref<3x128x128xbf16, #tpu.memory_space<vmem>>, vector<1x128x128xbf16>
    %119 = vector.shape_cast %118 : vector<1x128x128xbf16> to vector<128x128xbf16>
    %cst_73 = arith.constant dense<0.000000e+00> : vector<34x128xf32>
    %120 = tpu.matmul %117, %119, %cst_73 {dimension_numbers = #tpu.dot_dimension_numbers<[1], [0], [0], [1], [0, 0, 1, 1], [], []>} : vector<34x128xbf16>, vector<128x128xbf16>, vector<34x128xf32> -> vector<34x128xf32>
    %c1_74 = arith.constant 1 : index
    %c0_75 = arith.constant 0 : index
    %121 = vector.load %arg12[%c1_74, %c0_75] : memref<36x128xf32, #tpu.memory_space<vmem>>, vector<34x128xf32>
    %122 = arith.truncf %121 : vector<34x128xf32> to vector<34x128xbf16>
    %c1_76 = arith.constant 1 : index
    %c0_77 = arith.constant 0 : index
    %c0_78 = arith.constant 0 : index
    %123 = vector.load %arg6[%c1_76, %c0_77, %c0_78] : memref<3x128x128xbf16, #tpu.memory_space<vmem>>, vector<1x128x128xbf16>
    %124 = vector.shape_cast %123 : vector<1x128x128xbf16> to vector<128x128xbf16>
    %cst_79 = arith.constant dense<0.000000e+00> : vector<34x128xf32>
    %125 = tpu.matmul %122, %124, %cst_79 {dimension_numbers = #tpu.dot_dimension_numbers<[1], [0], [0], [1], [0, 0, 1, 1], [], []>} : vector<34x128xbf16>, vector<128x128xbf16>, vector<34x128xf32> -> vector<34x128xf32>
    %126 = arith.addf %120, %125 : vector<34x128xf32>
    %c2_80 = arith.constant 2 : index
    %c0_81 = arith.constant 0 : index
    %127 = vector.load %arg12[%c2_80, %c0_81] : memref<36x128xf32, #tpu.memory_space<vmem>>, vector<34x128xf32>
    %128 = arith.truncf %127 : vector<34x128xf32> to vector<34x128xbf16>
    %c2_82 = arith.constant 2 : index
    %c0_83 = arith.constant 0 : index
    %c0_84 = arith.constant 0 : index
    %129 = vector.load %arg6[%c2_82, %c0_83, %c0_84] : memref<3x128x128xbf16, #tpu.memory_space<vmem>>, vector<1x128x128xbf16>
    %130 = vector.shape_cast %129 : vector<1x128x128xbf16> to vector<128x128xbf16>
    %cst_85 = arith.constant dense<0.000000e+00> : vector<34x128xf32>
    %131 = tpu.matmul %128, %130, %cst_85 {dimension_numbers = #tpu.dot_dimension_numbers<[1], [0], [0], [1], [0, 0, 1, 1], [], []>} : vector<34x128xbf16>, vector<128x128xbf16>, vector<34x128xf32> -> vector<34x128xf32>
    %132 = arith.addf %126, %131 : vector<34x128xf32>
    %133 = vector.broadcast %113 : vector<1x128xf32> to vector<34x128xf32>
    %134 = arith.addf %132, %133 : vector<34x128xf32>
    %135 = vector.extract_strided_slice %134 {offsets = [0, 0], sizes = [16, 128], strides = [1, 1]} : vector<34x128xf32> to vector<16x128xf32>
    %cst_86 = arith.constant dense<0.000000e+00> : vector<128xf32>
    %136 = vector.multi_reduction <add>, %135, %cst_86 [0] : vector<16x128xf32> to vector<128xf32>
    %137 = vector.shape_cast %136 : vector<128xf32> to vector<1x128xf32>
    %138 = vector.extract_strided_slice %134 {offsets = [18, 0], sizes = [16, 128], strides = [1, 1]} : vector<34x128xf32> to vector<16x128xf32>
    %cst_87 = arith.constant dense<0.000000e+00> : vector<128xf32>
    %139 = vector.multi_reduction <add>, %138, %cst_87 [0] : vector<16x128xf32> to vector<128xf32>
    %140 = vector.shape_cast %139 : vector<128xf32> to vector<1x128xf32>
    %141 = tpu.concatenate %137, %140 in 0 : vector<1x128xf32>, vector<1x128xf32> -> vector<2x128xf32>
    %c4_i32_88 = arith.constant 4 : i32
    %142 = tpu.dynamic_rotate %141 by %c4_i32_88 dim 1 : vector<2x128xf32>, i32 -> vector<2x128xf32>
    %143 = arith.addf %141, %142 : vector<2x128xf32>
    %c8_i32_89 = arith.constant 8 : i32
    %144 = tpu.dynamic_rotate %143 by %c8_i32_89 dim 1 : vector<2x128xf32>, i32 -> vector<2x128xf32>
    %145 = arith.addf %143, %144 : vector<2x128xf32>
    %c16_i32_90 = arith.constant 16 : i32
    %146 = tpu.dynamic_rotate %145 by %c16_i32_90 dim 1 : vector<2x128xf32>, i32 -> vector<2x128xf32>
    %147 = arith.addf %145, %146 : vector<2x128xf32>
    %c32_i32_91 = arith.constant 32 : i32
    %148 = tpu.dynamic_rotate %147 by %c32_i32_91 dim 1 : vector<2x128xf32>, i32 -> vector<2x128xf32>
    %149 = arith.addf %147, %148 : vector<2x128xf32>
    %c64_i32_92 = arith.constant 64 : i32
    %150 = tpu.dynamic_rotate %149 by %c64_i32_92 dim 1 : vector<2x128xf32>, i32 -> vector<2x128xf32>
    %151 = arith.addf %149, %150 : vector<2x128xf32>
    %cst_93 = arith.constant 0.001953125 : f32
    %152 = vector.broadcast %cst_93 : f32 to vector<2x128xf32>
    %153 = arith.mulf %151, %152 : vector<2x128xf32>
    %154 = vector.extract_strided_slice %134 {offsets = [0, 0], sizes = [16, 128], strides = [1, 1]} : vector<34x128xf32> to vector<16x128xf32>
    %155 = vector.extract_strided_slice %153 {offsets = [0, 0], sizes = [1, 128], strides = [1, 1]} : vector<2x128xf32> to vector<1x128xf32>
    %156 = vector.broadcast %155 : vector<1x128xf32> to vector<16x128xf32>
    %157 = arith.subf %154, %156 : vector<16x128xf32>
    %158 = vector.extract_strided_slice %134 {offsets = [18, 0], sizes = [16, 128], strides = [1, 1]} : vector<34x128xf32> to vector<16x128xf32>
    %159 = vector.extract_strided_slice %153 {offsets = [1, 0], sizes = [1, 128], strides = [1, 1]} : vector<2x128xf32> to vector<1x128xf32>
    %160 = vector.broadcast %159 : vector<1x128xf32> to vector<16x128xf32>
    %161 = arith.subf %158, %160 : vector<16x128xf32>
    %162 = arith.mulf %157, %157 : vector<16x128xf32>
    %cst_94 = arith.constant dense<0.000000e+00> : vector<128xf32>
    %163 = vector.multi_reduction <add>, %162, %cst_94 [0] : vector<16x128xf32> to vector<128xf32>
    %164 = vector.shape_cast %163 : vector<128xf32> to vector<1x128xf32>
    %165 = arith.mulf %161, %161 : vector<16x128xf32>
    %cst_95 = arith.constant dense<0.000000e+00> : vector<128xf32>
    %166 = vector.multi_reduction <add>, %165, %cst_95 [0] : vector<16x128xf32> to vector<128xf32>
    %167 = vector.shape_cast %166 : vector<128xf32> to vector<1x128xf32>
    %168 = tpu.concatenate %164, %167 in 0 : vector<1x128xf32>, vector<1x128xf32> -> vector<2x128xf32>
    %c4_i32_96 = arith.constant 4 : i32
    %169 = tpu.dynamic_rotate %168 by %c4_i32_96 dim 1 : vector<2x128xf32>, i32 -> vector<2x128xf32>
    %170 = arith.addf %168, %169 : vector<2x128xf32>
    %c8_i32_97 = arith.constant 8 : i32
    %171 = tpu.dynamic_rotate %170 by %c8_i32_97 dim 1 : vector<2x128xf32>, i32 -> vector<2x128xf32>
    %172 = arith.addf %170, %171 : vector<2x128xf32>
    %c16_i32_98 = arith.constant 16 : i32
    %173 = tpu.dynamic_rotate %172 by %c16_i32_98 dim 1 : vector<2x128xf32>, i32 -> vector<2x128xf32>
    %174 = arith.addf %172, %173 : vector<2x128xf32>
    %c32_i32_99 = arith.constant 32 : i32
    %175 = tpu.dynamic_rotate %174 by %c32_i32_99 dim 1 : vector<2x128xf32>, i32 -> vector<2x128xf32>
    %176 = arith.addf %174, %175 : vector<2x128xf32>
    %c64_i32_100 = arith.constant 64 : i32
    %177 = tpu.dynamic_rotate %176 by %c64_i32_100 dim 1 : vector<2x128xf32>, i32 -> vector<2x128xf32>
    %178 = arith.addf %176, %177 : vector<2x128xf32>
    %cst_101 = arith.constant 0.001953125 : f32
    %179 = vector.broadcast %cst_101 : f32 to vector<2x128xf32>
    %180 = arith.mulf %178, %179 : vector<2x128xf32>
    %cst_102 = arith.constant 9.99999974E-6 : f32
    %181 = vector.broadcast %cst_102 : f32 to vector<2x128xf32>
    %182 = arith.addf %180, %181 : vector<2x128xf32>
    %183 = math.rsqrt %182 : vector<2x128xf32>
    %184 = vector.broadcast %114 : vector<1x128xf32> to vector<2x128xf32>
    %185 = arith.mulf %183, %184 : vector<2x128xf32>
    %186 = vector.extract_strided_slice %185 {offsets = [0, 0], sizes = [1, 128], strides = [1, 1]} : vector<2x128xf32> to vector<1x128xf32>
    %187 = vector.broadcast %186 : vector<1x128xf32> to vector<16x128xf32>
    %188 = arith.mulf %157, %187 : vector<16x128xf32>
    %189 = vector.broadcast %115 : vector<1x128xf32> to vector<16x128xf32>
    %190 = arith.addf %188, %189 : vector<16x128xf32>
    %191 = arith.negf %190 : vector<16x128xf32>
    %192 = math.exp %191 : vector<16x128xf32>
    %cst_103 = arith.constant 1.000000e+00 : f32
    %193 = vector.broadcast %cst_103 : f32 to vector<16x128xf32>
    %194 = arith.addf %193, %192 : vector<16x128xf32>
    %195 = arith.divf %193, %194 : vector<16x128xf32>
    %196 = arith.mulf %190, %195 : vector<16x128xf32>
    %197 = vector.extract_strided_slice %185 {offsets = [1, 0], sizes = [1, 128], strides = [1, 1]} : vector<2x128xf32> to vector<1x128xf32>
    %198 = vector.broadcast %197 : vector<1x128xf32> to vector<16x128xf32>
    %199 = arith.mulf %161, %198 : vector<16x128xf32>
    %200 = vector.broadcast %115 : vector<1x128xf32> to vector<16x128xf32>
    %201 = arith.addf %199, %200 : vector<16x128xf32>
    %202 = arith.negf %201 : vector<16x128xf32>
    %203 = math.exp %202 : vector<16x128xf32>
    %cst_104 = arith.constant 1.000000e+00 : f32
    %204 = vector.broadcast %cst_104 : f32 to vector<16x128xf32>
    %205 = arith.addf %204, %203 : vector<16x128xf32>
    %206 = arith.divf %204, %205 : vector<16x128xf32>
    %207 = arith.mulf %201, %206 : vector<16x128xf32>
    %c1_105 = arith.constant 1 : index
    %c0_106 = arith.constant 0 : index
    %208 = vector.load %arg12[%c1_105, %c0_106] : memref<36x128xf32, #tpu.memory_space<vmem>>, vector<16x128xf32>
    tpu.vector_store %arg12[%c1_105, %c0_106], %196 {strides = array<i32>} : memref<36x128xf32, #tpu.memory_space<vmem>>, vector<16x128xf32>,
    %c19_107 = arith.constant 19 : index
    %c0_108 = arith.constant 0 : index
    %209 = vector.load %arg12[%c19_107, %c0_108] : memref<36x128xf32, #tpu.memory_space<vmem>>, vector<16x128xf32>
    tpu.vector_store %arg12[%c19_107, %c0_108], %207 {strides = array<i32>} : memref<36x128xf32, #tpu.memory_space<vmem>>, vector<16x128xf32>,
    %c0_109 = arith.constant 0 : index
    %c0_110 = arith.constant 0 : index
    %210 = vector.load %arg7[%c0_109, %c0_110] : memref<1x128xf32, #tpu.memory_space<vmem>>, vector<1x128xf32>
    %c0_111 = arith.constant 0 : index
    %c0_112 = arith.constant 0 : index
    %211 = vector.load %arg8[%c0_111, %c0_112] : memref<1x128xf32, #tpu.memory_space<vmem>>, vector<1x128xf32>
    %c0_113 = arith.constant 0 : index
    %c0_114 = arith.constant 0 : index
    %212 = vector.load %arg9[%c0_113, %c0_114] : memref<1x128xf32, #tpu.memory_space<vmem>>, vector<1x128xf32>
    %c0_115 = arith.constant 0 : index
    %c0_116 = arith.constant 0 : index
    %213 = vector.load %arg12[%c0_115, %c0_116] : memref<36x128xf32, #tpu.memory_space<vmem>>, vector<34x128xf32>
    %214 = arith.truncf %213 : vector<34x128xf32> to vector<34x128xbf16>
    %c0_117 = arith.constant 0 : index
    %c0_118 = arith.constant 0 : index
    %c0_119 = arith.constant 0 : index
    %215 = vector.load %arg6[%c0_117, %c0_118, %c0_119] : memref<3x128x128xbf16, #tpu.memory_space<vmem>>, vector<1x128x128xbf16>
    %216 = vector.shape_cast %215 : vector<1x128x128xbf16> to vector<128x128xbf16>
    %cst_120 = arith.constant dense<0.000000e+00> : vector<34x128xf32>
    %217 = tpu.matmul %214, %216, %cst_120 {dimension_numbers = #tpu.dot_dimension_numbers<[1], [0], [0], [1], [0, 0, 1, 1], [], []>} : vector<34x128xbf16>, vector<128x128xbf16>, vector<34x128xf32> -> vector<34x128xf32>
    %c1_121 = arith.constant 1 : index
    %c0_122 = arith.constant 0 : index
    %218 = vector.load %arg12[%c1_121, %c0_122] : memref<36x128xf32, #tpu.memory_space<vmem>>, vector<34x128xf32>
    %219 = arith.truncf %218 : vector<34x128xf32> to vector<34x128xbf16>
    %c1_123 = arith.constant 1 : index
    %c0_124 = arith.constant 0 : index
    %c0_125 = arith.constant 0 : index
    %220 = vector.load %arg6[%c1_123, %c0_124, %c0_125] : memref<3x128x128xbf16, #tpu.memory_space<vmem>>, vector<1x128x128xbf16>
    %221 = vector.shape_cast %220 : vector<1x128x128xbf16> to vector<128x128xbf16>
    %cst_126 = arith.constant dense<0.000000e+00> : vector<34x128xf32>
    %222 = tpu.matmul %219, %221, %cst_126 {dimension_numbers = #tpu.dot_dimension_numbers<[1], [0], [0], [1], [0, 0, 1, 1], [], []>} : vector<34x128xbf16>, vector<128x128xbf16>, vector<34x128xf32> -> vector<34x128xf32>
    %223 = arith.addf %217, %222 : vector<34x128xf32>
    %c2_127 = arith.constant 2 : index
    %c0_128 = arith.constant 0 : index
    %224 = vector.load %arg12[%c2_127, %c0_128] : memref<36x128xf32, #tpu.memory_space<vmem>>, vector<34x128xf32>
    %225 = arith.truncf %224 : vector<34x128xf32> to vector<34x128xbf16>
    %c2_129 = arith.constant 2 : index
    %c0_130 = arith.constant 0 : index
    %c0_131 = arith.constant 0 : index
    %226 = vector.load %arg6[%c2_129, %c0_130, %c0_131] : memref<3x128x128xbf16, #tpu.memory_space<vmem>>, vector<1x128x128xbf16>
    %227 = vector.shape_cast %226 : vector<1x128x128xbf16> to vector<128x128xbf16>
    %cst_132 = arith.constant dense<0.000000e+00> : vector<34x128xf32>
    %228 = tpu.matmul %225, %227, %cst_132 {dimension_numbers = #tpu.dot_dimension_numbers<[1], [0], [0], [1], [0, 0, 1, 1], [], []>} : vector<34x128xbf16>, vector<128x128xbf16>, vector<34x128xf32> -> vector<34x128xf32>
    %229 = arith.addf %223, %228 : vector<34x128xf32>
    %230 = vector.broadcast %210 : vector<1x128xf32> to vector<34x128xf32>
    %231 = arith.addf %229, %230 : vector<34x128xf32>
    %232 = vector.extract_strided_slice %231 {offsets = [0, 0], sizes = [16, 128], strides = [1, 1]} : vector<34x128xf32> to vector<16x128xf32>
    %cst_133 = arith.constant dense<0.000000e+00> : vector<128xf32>
    %233 = vector.multi_reduction <add>, %232, %cst_133 [0] : vector<16x128xf32> to vector<128xf32>
    %234 = vector.shape_cast %233 : vector<128xf32> to vector<1x128xf32>
    %235 = vector.extract_strided_slice %231 {offsets = [18, 0], sizes = [16, 128], strides = [1, 1]} : vector<34x128xf32> to vector<16x128xf32>
    %cst_134 = arith.constant dense<0.000000e+00> : vector<128xf32>
    %236 = vector.multi_reduction <add>, %235, %cst_134 [0] : vector<16x128xf32> to vector<128xf32>
    %237 = vector.shape_cast %236 : vector<128xf32> to vector<1x128xf32>
    %238 = tpu.concatenate %234, %237 in 0 : vector<1x128xf32>, vector<1x128xf32> -> vector<2x128xf32>
    %c4_i32_135 = arith.constant 4 : i32
    %239 = tpu.dynamic_rotate %238 by %c4_i32_135 dim 1 : vector<2x128xf32>, i32 -> vector<2x128xf32>
    %240 = arith.addf %238, %239 : vector<2x128xf32>
    %c8_i32_136 = arith.constant 8 : i32
    %241 = tpu.dynamic_rotate %240 by %c8_i32_136 dim 1 : vector<2x128xf32>, i32 -> vector<2x128xf32>
    %242 = arith.addf %240, %241 : vector<2x128xf32>
    %c16_i32_137 = arith.constant 16 : i32
    %243 = tpu.dynamic_rotate %242 by %c16_i32_137 dim 1 : vector<2x128xf32>, i32 -> vector<2x128xf32>
    %244 = arith.addf %242, %243 : vector<2x128xf32>
    %c32_i32_138 = arith.constant 32 : i32
    %245 = tpu.dynamic_rotate %244 by %c32_i32_138 dim 1 : vector<2x128xf32>, i32 -> vector<2x128xf32>
    %246 = arith.addf %244, %245 : vector<2x128xf32>
    %c64_i32_139 = arith.constant 64 : i32
    %247 = tpu.dynamic_rotate %246 by %c64_i32_139 dim 1 : vector<2x128xf32>, i32 -> vector<2x128xf32>
    %248 = arith.addf %246, %247 : vector<2x128xf32>
    %cst_140 = arith.constant 0.001953125 : f32
    %249 = vector.broadcast %cst_140 : f32 to vector<2x128xf32>
    %250 = arith.mulf %248, %249 : vector<2x128xf32>
    %251 = vector.extract_strided_slice %231 {offsets = [0, 0], sizes = [16, 128], strides = [1, 1]} : vector<34x128xf32> to vector<16x128xf32>
    %252 = vector.extract_strided_slice %250 {offsets = [0, 0], sizes = [1, 128], strides = [1, 1]} : vector<2x128xf32> to vector<1x128xf32>
    %253 = vector.broadcast %252 : vector<1x128xf32> to vector<16x128xf32>
    %254 = arith.subf %251, %253 : vector<16x128xf32>
    %255 = vector.extract_strided_slice %231 {offsets = [18, 0], sizes = [16, 128], strides = [1, 1]} : vector<34x128xf32> to vector<16x128xf32>
    %256 = vector.extract_strided_slice %250 {offsets = [1, 0], sizes = [1, 128], strides = [1, 1]} : vector<2x128xf32> to vector<1x128xf32>
    %257 = vector.broadcast %256 : vector<1x128xf32> to vector<16x128xf32>
    %258 = arith.subf %255, %257 : vector<16x128xf32>
    %259 = arith.mulf %254, %254 : vector<16x128xf32>
    %cst_141 = arith.constant dense<0.000000e+00> : vector<128xf32>
    %260 = vector.multi_reduction <add>, %259, %cst_141 [0] : vector<16x128xf32> to vector<128xf32>
    %261 = vector.shape_cast %260 : vector<128xf32> to vector<1x128xf32>
    %262 = arith.mulf %258, %258 : vector<16x128xf32>
    %cst_142 = arith.constant dense<0.000000e+00> : vector<128xf32>
    %263 = vector.multi_reduction <add>, %262, %cst_142 [0] : vector<16x128xf32> to vector<128xf32>
    %264 = vector.shape_cast %263 : vector<128xf32> to vector<1x128xf32>
    %265 = tpu.concatenate %261, %264 in 0 : vector<1x128xf32>, vector<1x128xf32> -> vector<2x128xf32>
    %c4_i32_143 = arith.constant 4 : i32
    %266 = tpu.dynamic_rotate %265 by %c4_i32_143 dim 1 : vector<2x128xf32>, i32 -> vector<2x128xf32>
    %267 = arith.addf %265, %266 : vector<2x128xf32>
    %c8_i32_144 = arith.constant 8 : i32
    %268 = tpu.dynamic_rotate %267 by %c8_i32_144 dim 1 : vector<2x128xf32>, i32 -> vector<2x128xf32>
    %269 = arith.addf %267, %268 : vector<2x128xf32>
    %c16_i32_145 = arith.constant 16 : i32
    %270 = tpu.dynamic_rotate %269 by %c16_i32_145 dim 1 : vector<2x128xf32>, i32 -> vector<2x128xf32>
    %271 = arith.addf %269, %270 : vector<2x128xf32>
    %c32_i32_146 = arith.constant 32 : i32
    %272 = tpu.dynamic_rotate %271 by %c32_i32_146 dim 1 : vector<2x128xf32>, i32 -> vector<2x128xf32>
    %273 = arith.addf %271, %272 : vector<2x128xf32>
    %c64_i32_147 = arith.constant 64 : i32
    %274 = tpu.dynamic_rotate %273 by %c64_i32_147 dim 1 : vector<2x128xf32>, i32 -> vector<2x128xf32>
    %275 = arith.addf %273, %274 : vector<2x128xf32>
    %cst_148 = arith.constant 0.001953125 : f32
    %276 = vector.broadcast %cst_148 : f32 to vector<2x128xf32>
    %277 = arith.mulf %275, %276 : vector<2x128xf32>
    %cst_149 = arith.constant 9.99999974E-6 : f32
    %278 = vector.broadcast %cst_149 : f32 to vector<2x128xf32>
    %279 = arith.addf %277, %278 : vector<2x128xf32>
    %280 = math.rsqrt %279 : vector<2x128xf32>
    %281 = vector.broadcast %211 : vector<1x128xf32> to vector<2x128xf32>
    %282 = arith.mulf %280, %281 : vector<2x128xf32>
    %283 = vector.extract_strided_slice %282 {offsets = [0, 0], sizes = [1, 128], strides = [1, 1]} : vector<2x128xf32> to vector<1x128xf32>
    %284 = vector.broadcast %283 : vector<1x128xf32> to vector<16x128xf32>
    %285 = arith.mulf %254, %284 : vector<16x128xf32>
    %286 = vector.broadcast %212 : vector<1x128xf32> to vector<16x128xf32>
    %287 = arith.addf %285, %286 : vector<16x128xf32>
    %288 = arith.negf %287 : vector<16x128xf32>
    %289 = math.exp %288 : vector<16x128xf32>
    %cst_150 = arith.constant 1.000000e+00 : f32
    %290 = vector.broadcast %cst_150 : f32 to vector<16x128xf32>
    %291 = arith.addf %290, %289 : vector<16x128xf32>
    %292 = arith.divf %290, %291 : vector<16x128xf32>
    %293 = arith.mulf %287, %292 : vector<16x128xf32>
    %294 = vector.extract_strided_slice %282 {offsets = [1, 0], sizes = [1, 128], strides = [1, 1]} : vector<2x128xf32> to vector<1x128xf32>
    %295 = vector.broadcast %294 : vector<1x128xf32> to vector<16x128xf32>
    %296 = arith.mulf %258, %295 : vector<16x128xf32>
    %297 = vector.broadcast %212 : vector<1x128xf32> to vector<16x128xf32>
    %298 = arith.addf %296, %297 : vector<16x128xf32>
    %299 = arith.negf %298 : vector<16x128xf32>
    %300 = math.exp %299 : vector<16x128xf32>
    %cst_151 = arith.constant 1.000000e+00 : f32
    %301 = vector.broadcast %cst_151 : f32 to vector<16x128xf32>
    %302 = arith.addf %301, %300 : vector<16x128xf32>
    %303 = arith.divf %301, %302 : vector<16x128xf32>
    %304 = arith.mulf %298, %303 : vector<16x128xf32>
    %c0_152 = arith.constant 0 : index
    %c0_153 = arith.constant 0 : index
    %c0_154 = arith.constant 0 : index
    %305 = vector.load %arg10[%c0_152, %c0_153, %c0_154] : memref<2x16x128xf32, #tpu.memory_space<vmem>>, vector<1x16x128xf32>
    %306 = vector.shape_cast %305 : vector<1x16x128xf32> to vector<16x128xf32>
    %307 = vector.shape_cast %293 : vector<16x128xf32> to vector<1x16x128xf32>
    tpu.vector_store %arg10[%c0_152, %c0_153, %c0_154], %307 {strides = array<i32>} : memref<2x16x128xf32, #tpu.memory_space<vmem>>, vector<1x16x128xf32>,
    %c1_155 = arith.constant 1 : index
    %c0_156 = arith.constant 0 : index
    %c0_157 = arith.constant 0 : index
    %308 = vector.load %arg10[%c1_155, %c0_156, %c0_157] : memref<2x16x128xf32, #tpu.memory_space<vmem>>, vector<1x16x128xf32>
    %309 = vector.shape_cast %308 : vector<1x16x128xf32> to vector<16x128xf32>
    %310 = vector.shape_cast %304 : vector<16x128xf32> to vector<1x16x128xf32>
    tpu.vector_store %arg10[%c1_155, %c0_156, %c0_157], %310 {strides = array<i32>} : memref<2x16x128xf32, #tpu.memory_space<vmem>>, vector<1x16x128xf32>,
    return
  }
  func.func @transform_0(%arg0: i32) -> (i32, i32, i32) {
    %c0_i32 = arith.constant 0 : i32
    %c0_i32_0 = arith.constant 0 : i32
    %c0_i32_1 = arith.constant 0 : i32
    return %arg0, %c0_i32, %c0_i32_0 : i32, i32, i32
  }
  func.func @transform_1(%arg0: i32) -> (i32, i32, i32) {
    %c0_i32 = arith.constant 0 : i32
    %c0_i32_0 = arith.constant 0 : i32
    %c0_i32_1 = arith.constant 0 : i32
    %c0_i32_2 = arith.constant 0 : i32
    return %c0_i32, %c0_i32_0, %c0_i32_1 : i32, i32, i32
  }
  func.func @transform_2(%arg0: i32) -> (i32, i32) {
    %c0_i32 = arith.constant 0 : i32
    %c0_i32_0 = arith.constant 0 : i32
    %c0_i32_1 = arith.constant 0 : i32
    return %c0_i32, %c0_i32_0 : i32, i32
  }
  func.func @transform_3(%arg0: i32) -> (i32, i32) {
    %c0_i32 = arith.constant 0 : i32
    %c0_i32_0 = arith.constant 0 : i32
    %c0_i32_1 = arith.constant 0 : i32
    return %c0_i32, %c0_i32_0 : i32, i32
  }
  func.func @transform_4(%arg0: i32) -> (i32, i32) {
    %c0_i32 = arith.constant 0 : i32
    %c0_i32_0 = arith.constant 0 : i32
    %c0_i32_1 = arith.constant 0 : i32
    return %c0_i32, %c0_i32_0 : i32, i32
  }
  func.func @transform_5(%arg0: i32) -> (i32, i32, i32) {
    %c0_i32 = arith.constant 0 : i32
    %c0_i32_0 = arith.constant 0 : i32
    %c0_i32_1 = arith.constant 0 : i32
    %c0_i32_2 = arith.constant 0 : i32
    return %c0_i32, %c0_i32_0, %c0_i32_1 : i32, i32, i32
  }
  func.func @transform_6(%arg0: i32) -> (i32, i32) {
    %c0_i32 = arith.constant 0 : i32
    %c0_i32_0 = arith.constant 0 : i32
    %c0_i32_1 = arith.constant 0 : i32
    return %c0_i32, %c0_i32_0 : i32, i32
  }
  func.func @transform_7(%arg0: i32) -> (i32, i32) {
    %c0_i32 = arith.constant 0 : i32
    %c0_i32_0 = arith.constant 0 : i32
    %c0_i32_1 = arith.constant 0 : i32
    return %c0_i32, %c0_i32_0 : i32, i32
  }
  func.func @transform_8(%arg0: i32) -> (i32, i32) {
    %c0_i32 = arith.constant 0 : i32
    %c0_i32_0 = arith.constant 0 : i32
    %c0_i32_1 = arith.constant 0 : i32
    return %c0_i32, %c0_i32_0 : i32, i32
  }
  func.func @transform_9(%arg0: i32) -> (i32, i32, i32) {
    %c0_i32 = arith.constant 0 : i32
    %c0_i32_0 = arith.constant 0 : i32
    %c0_i32_1 = arith.constant 0 : i32
    return %arg0, %c0_i32, %c0_i32_0 : i32, i32, i32
  }
}

</mosaic_0001>

<llo_original>
// kernel: tpu_custom_call.1
$region0: #{tpu_custom_call.1}
  #allocation0 [shape = 'u32[]', space=smem, size = 0x4, offset = 0x4, fixed_abs, tag = 'smem constant byte address 0x4 - core index']
  #allocation1 [shape = 'u32[72,128]{1,0:T(1,128)}', space=vmem, size = 0x9000, scoped, tag = 'internal scratch']
  #allocation2 [shape = 'f32[36,64]{1,0:T(8,128)}', space=vmem, size = 0x5000, scoped, tag = 'scratch operand']
  #allocation3 [shape = 'f32[36,128]{1,0:T(8,128)}', space=vmem, size = 0x5000, scoped, tag = 'scratch operand']
  %s0 = inlined_call_operand.hbm [shape: f32[2,16,64], index: 0, kind: input, shape index: {}]
  %s1 = inlined_call_operand.hbm [shape: bf16[3,64,128], index: 1, kind: input, shape index: {}]
  %s2 = inlined_call_operand.vmem [shape: f32[1,128], index: 2, kind: input, shape index: {}]
  %s3 = inlined_call_operand.vmem [shape: f32[1,128], index: 3, kind: input, shape index: {}]
  %s4 = inlined_call_operand.vmem [shape: f32[1,128], index: 4, kind: input, shape index: {}]
  %s5 = inlined_call_operand.hbm [shape: bf16[3,128,128], index: 5, kind: input, shape index: {}]
  %s6 = inlined_call_operand.vmem [shape: f32[1,128], index: 6, kind: input, shape index: {}]
  %s7 = inlined_call_operand.vmem [shape: f32[1,128], index: 7, kind: input, shape index: {}]
  %s8 = inlined_call_operand.vmem [shape: f32[1,128], index: 8, kind: input, shape index: {}]
  %s9 = inlined_call_operand.hbm [shape: f32[2,16,128], index: 9, kind: output, shape index: {}]
  %s10 = sld [smem:[#allocation0]]
  $region58: #{tpu_custom_call.1} parent=0
    _
  %s12 = ssub.s32 1, %s10
  %s13 = scalar_select 0, %s12, %s10
  $region1: #{tpu_custom_call.1} parent=0
    #allocation4 [shape = 'u8[16384]{0}', space=vmem, size = 0x4000, scoped, tag = 'input window, operand 0, single buffered']
    #allocation5 [shape = 's32[1]{0}', space=sflag, size = 0x4, scoped, tag = 'scoped memory for tpu_custom_call.1']
    #allocation6 [shape = 's32[1]{0}', space=sflag, size = 0x4, scoped, tag = 'scoped memory for tpu_custom_call.1']
    #allocation7 [shape = 'u8[49152]{0}', space=vmem, size = 0xc000, scoped, tag = 'input window, operand 1, single buffered']
    #allocation8 [shape = 's32[1]{0}', space=sflag, size = 0x4, scoped, tag = 'scoped memory for tpu_custom_call.1']
    #allocation9 [shape = 'u8[98304]{0}', space=vmem, size = 0x18000, scoped, tag = 'input window, operand 5, single buffered']
    #allocation10 [shape = 'u8[16384]{0}', space=vmem, size = 0x4000, scoped, tag = 'output window, operand 0, single buffered']
    %14 = vsyncpa [#allocation5], 0
    %15 = vsyncpa [#allocation8], 0
    %16 = vsyncpa [#allocation6], 0
    // Predicated region
    $region2: #{tpu_custom_call.1} parent=1 // pred_check
      _
    $region3: #{tpu_custom_call.1} parent=1 // pred_check_branch
      %18 = sbr.rel (0) target = $region5
    $region4: #{tpu_custom_call.1} parent=1 // pred_region
      %20 = vsyncadd [#allocation5], 0
      %s21 = sshll.u32 %s0, 4
      %s22 = int_to_ptr.hbm [resolvable:$true] %s21
      %s23 = sshll.u32 [#allocation4], 4
      %s24 = int_to_ptr.vmem [resolvable:$true] %s23
      %29 = dma.hbm_to_vmem [thread:$0]  %s22, 512, %s24, [#allocation5], 128, 128, 8
    $region5: #{tpu_custom_call.1} parent=1 // pred_fallthru
      _
    // Predicated region
    $region6: #{tpu_custom_call.1} parent=1 // pred_check
      _
    $region7: #{tpu_custom_call.1} parent=1 // pred_check_branch
      %31 = sbr.rel (0) target = $region9
    $region8: #{tpu_custom_call.1} parent=1 // pred_region
      %33 = vsyncadd [#allocation8], 0
      %s34 = sshll.u32 %s1, 4
      %s35 = int_to_ptr.hbm [resolvable:$true] %s34
      %s36 = sshll.u32 [#allocation7], 4
      %s37 = int_to_ptr.vmem [resolvable:$true] %s36
      %42 = dma.hbm_to_vmem [thread:$0]  %s35, 1536, %s37, [#allocation8], 64, 64, 4
    $region9: #{tpu_custom_call.1} parent=1 // pred_fallthru
      _
    // Predicated region
    $region10: #{tpu_custom_call.1} parent=1 // pred_check
      _
    $region11: #{tpu_custom_call.1} parent=1 // pred_check_branch
      %44 = sbr.rel (0) target = $region13
    $region12: #{tpu_custom_call.1} parent=1 // pred_region
      _
    $region13: #{tpu_custom_call.1} parent=1 // pred_fallthru
      _
    // Predicated region
    $region14: #{tpu_custom_call.1} parent=1 // pred_check
      _
    $region15: #{tpu_custom_call.1} parent=1 // pred_check_branch
      %46 = sbr.rel (0) target = $region17
    $region16: #{tpu_custom_call.1} parent=1 // pred_region
      _
    $region17: #{tpu_custom_call.1} parent=1 // pred_fallthru
      _
    // Predicated region
    $region18: #{tpu_custom_call.1} parent=1 // pred_check
      _
    $region19: #{tpu_custom_call.1} parent=1 // pred_check_branch
      %48 = sbr.rel (0) target = $region21
    $region20: #{tpu_custom_call.1} parent=1 // pred_region
      _
    $region21: #{tpu_custom_call.1} parent=1 // pred_fallthru
      _
    // Predicated region
    $region22: #{tpu_custom_call.1} parent=1 // pred_check
      _
    $region23: #{tpu_custom_call.1} parent=1 // pred_check_branch
      %50 = sbr.rel (0) target = $region25
    $region24: #{tpu_custom_call.1} parent=1 // pred_region
      %52 = vsyncadd [#allocation8], 0
      %s53 = sshll.u32 %s5, 4
      %s54 = int_to_ptr.hbm [resolvable:$true] %s53
      %s55 = sshll.u32 [#allocation9], 4
      %s56 = int_to_ptr.vmem [resolvable:$true] %s55
      %61 = dma.hbm_to_vmem [thread:$0]  %s54, 3072, %s56, [#allocation8], 64, 64, 4
    $region25: #{tpu_custom_call.1} parent=1 // pred_fallthru
      _
    // Predicated region
    $region26: #{tpu_custom_call.1} parent=1 // pred_check
      _
    $region27: #{tpu_custom_call.1} parent=1 // pred_check_branch
      %63 = sbr.rel (0) target = $region29
    $region28: #{tpu_custom_call.1} parent=1 // pred_region
      _
    $region29: #{tpu_custom_call.1} parent=1 // pred_fallthru
      _
    // Predicated region
    $region30: #{tpu_custom_call.1} parent=1 // pred_check
      _
    $region31: #{tpu_custom_call.1} parent=1 // pred_check_branch
      %65 = sbr.rel (0) target = $region33
    $region32: #{tpu_custom_call.1} parent=1 // pred_region
      _
    $region33: #{tpu_custom_call.1} parent=1 // pred_fallthru
      _
    // Predicated region
    $region34: #{tpu_custom_call.1} parent=1 // pred_check
      _
    $region35: #{tpu_custom_call.1} parent=1 // pred_check_branch
      %67 = sbr.rel (0) target = $region37
    $region36: #{tpu_custom_call.1} parent=1 // pred_region
      _
    $region37: #{tpu_custom_call.1} parent=1 // pred_fallthru
      _
    // Predicated region
    $region38: #{tpu_custom_call.1} parent=1 // pred_check
      _
    $region39: #{tpu_custom_call.1} parent=1 // pred_check_branch
      %69 = sbr.rel (0) target = $region41
    $region40: #{tpu_custom_call.1} parent=1 // pred_region
      %71 = dma.done [#allocation5], 512
    $region41: #{tpu_custom_call.1} parent=1 // pred_fallthru
      _
    // Predicated region
    $region42: #{tpu_custom_call.1} parent=1 // pred_check
      _
    $region43: #{tpu_custom_call.1} parent=1 // pred_check_branch
      %73 = sbr.rel (0) target = $region45
    $region44: #{tpu_custom_call.1} parent=1 // pred_region
      %75 = dma.done [#allocation8], 1536
    $region45: #{tpu_custom_call.1} parent=1 // pred_fallthru
      _
    // Predicated region
    $region46: #{tpu_custom_call.1} parent=1 // pred_check
      _
    $region47: #{tpu_custom_call.1} parent=1 // pred_check_branch
      %77 = sbr.rel (0) target = $region49
    $region48: #{tpu_custom_call.1} parent=1 // pred_region
      %79 = dma.done [#allocation8], 3072
    $region49: #{tpu_custom_call.1} parent=1 // pred_fallthru
      _
    %vm81 = vcmask 516096
    %82 = vst.msk [vmem:[#allocation2] sm:$0x1] %vm81, 0.0
    %83 = vst.msk [vmem:[#allocation2 + $0x11] sm:$0x1] %vm81, 0.0
    %84 = vst [vmem:[#allocation3] sm:$0x1] 0.0
    %85 = vst [vmem:[#allocation3 + $0x11] sm:$0x1] 0.0
    %86 = vst.msk [vmem:[#allocation2 + $0x12] sm:$0x1] %vm81, 0.0
    %87 = vst.msk [vmem:[#allocation2 + $0x23] sm:$0x1] %vm81, 0.0
    %88 = vst [vmem:[#allocation3 + $0x12] sm:$0x1] 0.0
    %89 = vst [vmem:[#allocation3 + $0x23] sm:$0x1] 0.0
    %v90 = vld [vmem:[#allocation4] sm:$0xff]
    %v91 = vld [vmem:[#allocation4 + $0x8] sm:$0xff]
    %vm92 = vcmask 523264
    %93 = vst.msk [vmem:[#allocation2 + $0x1] sm:$0xff] %vm92, %v90
    %94 = vst.msk [vmem:[#allocation2 + $0x9] sm:$0xff] %vm92, %v91
    %s95 = scalar_lea.vmem [#allocation4], 16
    %v96 = vld [vmem:[%s95] sm:$0xff]
    %v97 = vld [vmem:[%s95 + $0x8] sm:$0xff]
    %98 = vst.msk [vmem:[#allocation2 + $0x13] sm:$0xff] %vm92, %v96
    %99 = vst.msk [vmem:[#allocation2 + $0x1b] sm:$0xff] %vm92, %v97
    %v100 = vld [vmem:[%s2] sm:$0x1]
    %v101 = vld [vmem:[%s3] sm:$0x1]
    %v102 = vld [vmem:[%s4] sm:$0x1]
    %v103 = vld [vmem:[#allocation2] sm:$0xff]
    %v104 = vld [vmem:[#allocation2 + $0x8] sm:$0xff]
    %v105 = vld [vmem:[#allocation2 + $0x10] sm:$0xff]
    %v106 = vld [vmem:[#allocation2 + $0x18] sm:$0xff]
    %v107 = vld [vmem:[#allocation2 + $0x20] sm:$0x3]
    %v108 = vpack.c.bf16 %v104, %v103
    %v109 = vpack.c.bf16 %v106, %v105
    %v110 = vpack.c.bf16 %v107, %v107
    %v111 = vld [vmem:[#allocation7] sm:$0xf]
    %v112 = vld [vmem:[#allocation7 + $0x4] sm:$0xf]
    %v113 = vld [vmem:[#allocation7 + $0x8] sm:$0xf]
    %v114 = vld [vmem:[#allocation7 + $0xc] sm:$0xf]
    %v115 = vld [vmem:[#allocation7 + $0x10] sm:$0xf]
    %v116 = vld [vmem:[#allocation7 + $0x14] sm:$0xf]
    %v117 = vld [vmem:[#allocation7 + $0x18] sm:$0xf]
    %v118 = vld [vmem:[#allocation7 + $0x1c] sm:$0xf]
    %v119 = vld [vmem:[#allocation2 + $0x1] sm:$0xff]
    %v120 = vld [vmem:[#allocation2 + $0x9] sm:$0xff]
    %v121 = vld [vmem:[#allocation2 + $0x11] sm:$0xff]
    %v122 = vld [vmem:[#allocation2 + $0x19] sm:$0xff]
    %v123 = vld [vmem:[#allocation2 + $0x21] sm:$0x3]
    %v124 = vpack.c.bf16 %v120, %v119
    %v125 = vpack.c.bf16 %v122, %v121
    %v126 = vpack.c.bf16 %v123, %v123
    %s127 = scalar_lea.vmem [#allocation7], 32
    %v128 = vld [vmem:[%s127] sm:$0xf]
    %v129 = vld [vmem:[%s127 + $0x4] sm:$0xf]
    %v130 = vld [vmem:[%s127 + $0x8] sm:$0xf]
    %v131 = vld [vmem:[%s127 + $0xc] sm:$0xf]
    %v132 = vld [vmem:[%s127 + $0x10] sm:$0xf]
    %v133 = vld [vmem:[%s127 + $0x14] sm:$0xf]
    %v134 = vld [vmem:[%s127 + $0x18] sm:$0xf]
    %v135 = vld [vmem:[%s127 + $0x1c] sm:$0xf]
    %v144 = vunpack.c.l.b16 %v128
    %v145 = vunpack.c.l.b16 %v129
    %v146 = vunpack.c.l.b16 %v130
    %v147 = vunpack.c.l.b16 %v131
    %v148 = vunpack.c.l.b16 %v132
    %v149 = vunpack.c.l.b16 %v133
    %v150 = vunpack.c.l.b16 %v134
    %v151 = vunpack.c.l.b16 %v135
    %v152 = vpack.c.b16 %v145, %v144
    %v153 = vpack.c.b16 %v147, %v146
    %v154 = vpack.c.b16 %v149, %v148
    %v155 = vpack.c.b16 %v151, %v150
    %v161 = vsel %vm92, %v124, 0
    %v164 = vsel %vm92, %v125, 0
    %v167 = vsel %vm92, %v126, 0
    %169 = vmatpush.bf16.msra.mxu0 0
    %170 = vmatpush.bf16.msra.mxu0 0
    %171 = vmatpush.bf16.msra.mxu0 0
    %172 = vmatpush.bf16.msra.mxu0 0
    %173 = vmatpush.bf16.msra.mxu0 %v155
    %174 = vmatpush.bf16.msra.mxu0 %v154
    %175 = vmatpush.bf16.msra.mxu0 %v153
    %176 = vmatpush.bf16.msra.mxu0 %v152
    %177 = vmatmul.bf16.gmra.mxu0 %v161
    %v178 = vpop.f32.mrf.mxu0
    %v179 = vadd.f32 0.0, %v178
    %v180 = vpop.f32.mrf.mxu0
    %v181 = vadd.f32 0.0, %v180
    %182 = vmatmul.bf16.gmra.mxu0 %v164
    %v183 = vpop.f32.mrf.mxu0
    %v184 = vadd.f32 0.0, %v183
    %v185 = vpop.f32.mrf.mxu0
    %v186 = vadd.f32 0.0, %v185
    %187 = vmatmul.bf16.gmra.mxu0 %v167
    %v188 = vpop.f32.mrf.mxu0
    %v189 = vadd.f32 0.0, %v188
    %v190 = vpop.f32.mrf.mxu0
    %191 = vdwg.mxu0
    %v200 = vunpack.c.l.b16 %v111
    %v201 = vunpack.c.l.b16 %v112
    %v202 = vunpack.c.l.b16 %v113
    %v203 = vunpack.c.l.b16 %v114
    %v204 = vunpack.c.l.b16 %v115
    %v205 = vunpack.c.l.b16 %v116
    %v206 = vunpack.c.l.b16 %v117
    %v207 = vunpack.c.l.b16 %v118
    %v208 = vpack.c.b16 %v201, %v200
    %v209 = vpack.c.b16 %v203, %v202
    %v210 = vpack.c.b16 %v205, %v204
    %v211 = vpack.c.b16 %v207, %v206
    %v217 = vsel %vm92, %v108, 0
    %v220 = vsel %vm92, %v109, 0
    %v223 = vsel %vm92, %v110, 0
    %225 = vmatpush.bf16.msra.mxu0 0
    %226 = vmatpush.bf16.msra.mxu0 0
    %227 = vmatpush.bf16.msra.mxu0 0
    %228 = vmatpush.bf16.msra.mxu0 0
    %229 = vmatpush.bf16.msra.mxu0 %v211
    %230 = vmatpush.bf16.msra.mxu0 %v210
    %231 = vmatpush.bf16.msra.mxu0 %v209
    %232 = vmatpush.bf16.msra.mxu0 %v208
    %233 = vmatmul.bf16.gmra.mxu0 %v217
    %v234 = vpop.f32.mrf.mxu0
    %v235 = vadd.f32 %v179, %v234
    %v236 = vpop.f32.mrf.mxu0
    %v237 = vadd.f32 %v181, %v236
    %238 = vmatmul.bf16.gmra.mxu0 %v220
    %v239 = vpop.f32.mrf.mxu0
    %v240 = vadd.f32 %v184, %v239
    %v241 = vpop.f32.mrf.mxu0
    %v242 = vadd.f32 %v186, %v241
    %243 = vmatmul.bf16.gmra.mxu0 %v223
    %v244 = vpop.f32.mrf.mxu0
    %v245 = vadd.f32 %v189, %v244
    %v246 = vpop.f32.mrf.mxu0
    %247 = vdwg.mxu0
    %v248 = vld [vmem:[#allocation2 + $0x2] sm:$0xff]
    %v249 = vld [vmem:[#allocation2 + $0xa] sm:$0xff]
    %v250 = vld [vmem:[#allocation2 + $0x12] sm:$0xff]
    %v251 = vld [vmem:[#allocation2 + $0x1a] sm:$0xff]
    %v252 = vld [vmem:[#allocation2 + $0x22] sm:$0x3]
    %v253 = vpack.c.bf16 %v249, %v248
    %v254 = vpack.c.bf16 %v251, %v250
    %v255 = vpack.c.bf16 %v252, %v252
    %s256 = scalar_lea.vmem [#allocation7], 64
    %v257 = vld [vmem:[%s256] sm:$0xf]
    %v258 = vld [vmem:[%s256 + $0x4] sm:$0xf]
    %v259 = vld [vmem:[%s256 + $0x8] sm:$0xf]
    %v260 = vld [vmem:[%s256 + $0xc] sm:$0xf]
    %v261 = vld [vmem:[%s256 + $0x10] sm:$0xf]
    %v262 = vld [vmem:[%s256 + $0x14] sm:$0xf]
    %v263 = vld [vmem:[%s256 + $0x18] sm:$0xf]
    %v264 = vld [vmem:[%s256 + $0x1c] sm:$0xf]
    %v273 = vunpack.c.l.b16 %v257
    %v274 = vunpack.c.l.b16 %v258
    %v275 = vunpack.c.l.b16 %v259
    %v276 = vunpack.c.l.b16 %v260
    %v277 = vunpack.c.l.b16 %v261
    %v278 = vunpack.c.l.b16 %v262
    %v279 = vunpack.c.l.b16 %v263
    %v280 = vunpack.c.l.b16 %v264
    %v281 = vpack.c.b16 %v274, %v273
    %v282 = vpack.c.b16 %v276, %v275
    %v283 = vpack.c.b16 %v278, %v277
    %v284 = vpack.c.b16 %v280, %v279
    %v290 = vsel %vm92, %v253, 0
    %v293 = vsel %vm92, %v254, 0
    %v296 = vsel %vm92, %v255, 0
    %298 = vmatpush.bf16.msra.mxu0 0
    %299 = vmatpush.bf16.msra.mxu0 0
    %300 = vmatpush.bf16.msra.mxu0 0
    %301 = vmatpush.bf16.msra.mxu0 0
    %302 = vmatpush.bf16.msra.mxu0 %v284
    %303 = vmatpush.bf16.msra.mxu0 %v283
    %304 = vmatpush.bf16.msra.mxu0 %v282
    %305 = vmatpush.bf16.msra.mxu0 %v281
    %306 = vmatmul.bf16.gmra.mxu0 %v290
    %v307 = vpop.f32.mrf.mxu0
    %v308 = vadd.f32 0.0, %v307
    %v309 = vpop.f32.mrf.mxu0
    %v310 = vadd.f32 0.0, %v309
    %311 = vmatmul.bf16.gmra.mxu0 %v293
    %v312 = vpop.f32.mrf.mxu0
    %v313 = vadd.f32 0.0, %v312
    %v314 = vpop.f32.mrf.mxu0
    %v315 = vadd.f32 0.0, %v314
    %316 = vmatmul.bf16.gmra.mxu0 %v296
    %v317 = vpop.f32.mrf.mxu0
    %v318 = vadd.f32 0.0, %v317
    %v319 = vpop.f32.mrf.mxu0
    %320 = vdwg.mxu0
    %v321 = vadd.f32 %v235, %v308
    %v322 = vadd.f32 %v237, %v310
    %v323 = vadd.f32 %v240, %v313
    %v324 = vadd.f32 %v242, %v315
    %v325 = vadd.f32 %v245, %v318
    %v327 = vperm.slane %v100, 0
    %v329 = vadd.f32 %v321, %v327
    %v330 = vadd.f32 %v322, %v327
    %v331 = vadd.f32 %v323, %v327
    %v332 = vadd.f32 %v324, %v327
    %v333 = vadd.f32 %v325, %v327
    %v334 = vadd.f32 %v329, %v330
    %v335 = vrot.slane %v334, 4
    %v336 = vadd.f32 %v334, %v335
    %v337 = vrot.slane %v336, 2
    %v338 = vadd.f32 %v336, %v337
    %v339 = vrot.slane %v338, 1
    %v340 = vadd.f32 %v338, %v339
    %vm344 = vcmask 1045504
    %v345 = vrot.slane %v331, 2
    %v346 = vrot.slane %v332, 2
    %v347 = vsel %vm344, %v345, %v346
    %v348 = vrot.slane %v333, 2
    %v349 = vsel %vm344, %v346, %v348
    %v352 = vadd.f32 %v347, %v349
    %v353 = vrot.slane %v352, 4
    %v354 = vadd.f32 %v352, %v353
    %v355 = vrot.slane %v354, 2
    %v356 = vadd.f32 %v354, %v355
    %v357 = vrot.slane %v356, 1
    %v358 = vadd.f32 %v356, %v357
    %vm359 = vcmask 1040384
    %v360 = vsel %vm359, %v340, %v358
    %361 = vrot.lane.b32.xlu0 %v360, 4
    %v362 = vpop.permute.xlu0 %361
    %v363 = vadd.f32 %v360, %v362
    %364 = vrot.lane.b32.xlu0 %v363, 8
    %v365 = vpop.permute.xlu0 %364
    %v366 = vadd.f32 %v363, %v365
    %367 = vrot.lane.b32.xlu0 %v366, 16
    %v368 = vpop.permute.xlu0 %367
    %v369 = vadd.f32 %v366, %v368
    %370 = vrot.lane.b32.xlu0 %v369, 32
    %v371 = vpop.permute.xlu0 %370
    %v372 = vadd.f32 %v369, %v371
    %373 = vrot.lane.b32.xlu0 %v372, 64
    %v374 = vpop.permute.xlu0 %373
    %v375 = vadd.f32 %v372, %v374
    %v376 = vmul.f32 %v375, 0.001953125
    %v377 = vperm.slane %v376, 0
    %v378 = vsub.f32 %v329, %v377
    %v379 = vsub.f32 %v330, %v377
    %v380 = vperm.slane %v376, 1
    %v381 = vsub.f32 %v331, %v380
    %v382 = vsub.f32 %v332, %v380
    %v383 = vsub.f32 %v333, %v380
    %v384 = vmul.f32 %v378, %v378
    %v385 = vmul.f32 %v379, %v379
    %v386 = vadd.f32 %v384, %v385
    %v387 = vrot.slane %v386, 4
    %v388 = vadd.f32 %v386, %v387
    %v389 = vrot.slane %v388, 2
    %v390 = vadd.f32 %v388, %v389
    %v391 = vrot.slane %v390, 1
    %v392 = vadd.f32 %v390, %v391
    %v393 = vmul.f32 %v381, %v381
    %v394 = vmul.f32 %v382, %v382
    %v395 = vmul.f32 %v383, %v383
    %v399 = vrot.slane %v393, 2
    %v400 = vrot.slane %v394, 2
    %v401 = vsel %vm344, %v399, %v400
    %v402 = vrot.slane %v395, 2
    %v403 = vsel %vm344, %v400, %v402
    %v406 = vadd.f32 %v401, %v403
    %v407 = vrot.slane %v406, 4
    %v408 = vadd.f32 %v406, %v407
    %v409 = vrot.slane %v408, 2
    %v410 = vadd.f32 %v408, %v409
    %v411 = vrot.slane %v410, 1
    %v412 = vadd.f32 %v410, %v411
    %v413 = vsel %vm359, %v392, %v412
    %414 = vrot.lane.b32.xlu0 %v413, 4
    %v415 = vpop.permute.xlu0 %414
    %v416 = vadd.f32 %v413, %v415
    %417 = vrot.lane.b32.xlu0 %v416, 8
    %v418 = vpop.permute.xlu0 %417
    %v419 = vadd.f32 %v416, %v418
    %420 = vrot.lane.b32.xlu0 %v419, 16
    %v421 = vpop.permute.xlu0 %420
    %v422 = vadd.f32 %v419, %v421
    %423 = vrot.lane.b32.xlu0 %v422, 32
    %v424 = vpop.permute.xlu0 %423
    %v425 = vadd.f32 %v422, %v424
    %426 = vrot.lane.b32.xlu0 %v425, 64
    %v427 = vpop.permute.xlu0 %426
    %v428 = vadd.f32 %v425, %v427
    %v429 = vmul.f32 %v428, 0.001953125
    %v430 = vadd.f32 %v429, 1e-05
    %v431 = vrsqrt.pop %v430
    %v432 = vmul.f32 %v431, %v430
    %v433 = vmul.f32 %v432, %v431
    %v434 = vmul.f32 0.5, %v433
    %v435 = vsub.f32 1.5, %v434
    %v436 = vmul.f32 %v431, %v435
    %vm437 = vweird.f32 %v430
    %vm438 = vweird.f32 %v431
    %vm439 = vmor %vm437, %vm438
    %v440 = vsel %vm439, %v431, %v436
    %v442 = vperm.slane %v101, 0
    %v444 = vmul.f32 %v440, %v442
    %v445 = vperm.slane %v444, 0
    %v446 = vmul.f32 %v378, %v445
    %v447 = vmul.f32 %v379, %v445
    %v449 = vperm.slane %v102, 0
    %v451 = vadd.f32 %v446, %v449
    %v452 = vadd.f32 %v447, %v449
    %v453 = vxor.u32 %v451, 2147483648
    %v454 = vxor.u32 %v452, 2147483648
    %v455 = vmul.f32 %v453, 1.442695
    %v456 = vpow.pop %v455
    %v457 = vmul.f32 %v454, 1.442695
    %v458 = vpow.pop %v457
    %v459 = vadd.f32 %v456, 1.0
    %v460 = vadd.f32 %v458, 1.0
    %v461 = vrcp.pop %v459
    %v462 = vmul.f32 %v459, %v461
    %v463 = vsub.f32 1.0, %v462
    %v464 = vmul.f32 %v461, %v463
    %v465 = vadd.f32 %v461, %v464
    %vm466 = vweird.f32 %v459
    %vm467 = vweird.f32 %v461
    %vm468 = vmor %vm466, %vm467
    %v469 = vsel %vm468, %v461, %v465
    %v470 = vand.u32 2147483647, %v459
    %vm471 = vcmp.eq.f32.partialorder %v470, 8.507059e+37
    %v472 = vand.u32 %v459, 2147483648
    %v473 = vor.u32 1.1754944e-38, %v472
    %v474 = vsel %vm471, %v473, %v469
    %v475 = vmul.f32 1.0, %v474
    %v476 = vrcp.pop %v460
    %v477 = vmul.f32 %v460, %v476
    %v478 = vsub.f32 1.0, %v477
    %v479 = vmul.f32 %v476, %v478
    %v480 = vadd.f32 %v476, %v479
    %vm481 = vweird.f32 %v460
    %vm482 = vweird.f32 %v476
    %vm483 = vmor %vm481, %vm482
    %v484 = vsel %vm483, %v476, %v480
    %v485 = vand.u32 2147483647, %v460
    %vm486 = vcmp.eq.f32.partialorder %v485, 8.507059e+37
    %v487 = vand.u32 %v460, 2147483648
    %v488 = vor.u32 1.1754944e-38, %v487
    %v489 = vsel %vm486, %v488, %v484
    %v490 = vmul.f32 1.0, %v489
    %v491 = vmul.f32 %v451, %v475
    %v492 = vmul.f32 %v452, %v490
    %v493 = vperm.slane %v444, 1
    %v494 = vmul.f32 %v381, %v493
    %v495 = vmul.f32 %v382, %v493
    %v496 = vmul.f32 %v383, %v493
    %v497 = vadd.f32 %v494, %v449
    %v498 = vadd.f32 %v495, %v449
    %v499 = vadd.f32 %v496, %v449
    %v500 = vxor.u32 %v497, 2147483648
    %v501 = vxor.u32 %v498, 2147483648
    %v502 = vxor.u32 %v499, 2147483648
    %v503 = vmul.f32 %v500, 1.442695
    %v504 = vpow.pop %v503
    %v505 = vmul.f32 %v501, 1.442695
    %v506 = vpow.pop %v505
    %v507 = vmul.f32 %v502, 1.442695
    %v508 = vpow.pop %v507
    %v509 = vadd.f32 %v504, 1.0
    %v510 = vadd.f32 %v506, 1.0
    %v511 = vadd.f32 %v508, 1.0
    %v512 = vrcp.pop %v509
    %v513 = vmul.f32 %v509, %v512
    %v514 = vsub.f32 1.0, %v513
    %v515 = vmul.f32 %v512, %v514
    %v516 = vadd.f32 %v512, %v515
    %vm517 = vweird.f32 %v509
    %vm518 = vweird.f32 %v512
    %vm519 = vmor %vm517, %vm518
    %v520 = vsel %vm519, %v512, %v516
    %v521 = vand.u32 2147483647, %v509
    %vm522 = vcmp.eq.f32.partialorder %v521, 8.507059e+37
    %v523 = vand.u32 %v509, 2147483648
    %v524 = vor.u32 1.1754944e-38, %v523
    %v525 = vsel %vm522, %v524, %v520
    %v526 = vmul.f32 1.0, %v525
    %v527 = vrcp.pop %v510
    %v528 = vmul.f32 %v510, %v527
    %v529 = vsub.f32 1.0, %v528
    %v530 = vmul.f32 %v527, %v529
    %v531 = vadd.f32 %v527, %v530
    %vm532 = vweird.f32 %v510
    %vm533 = vweird.f32 %v527
    %vm534 = vmor %vm532, %vm533
    %v535 = vsel %vm534, %v527, %v531
    %v536 = vand.u32 2147483647, %v510
    %vm537 = vcmp.eq.f32.partialorder %v536, 8.507059e+37
    %v538 = vand.u32 %v510, 2147483648
    %v539 = vor.u32 1.1754944e-38, %v538
    %v540 = vsel %vm537, %v539, %v535
    %v541 = vmul.f32 1.0, %v540
    %v542 = vrcp.pop %v511
    %v543 = vmul.f32 %v511, %v542
    %v544 = vsub.f32 1.0, %v543
    %v545 = vmul.f32 %v542, %v544
    %v546 = vadd.f32 %v542, %v545
    %vm547 = vweird.f32 %v511
    %vm548 = vweird.f32 %v542
    %vm549 = vmor %vm547, %vm548
    %v550 = vsel %vm549, %v542, %v546
    %v551 = vand.u32 2147483647, %v511
    %vm552 = vcmp.eq.f32.partialorder %v551, 8.507059e+37
    %v553 = vand.u32 %v511, 2147483648
    %v554 = vor.u32 1.1754944e-38, %v553
    %v555 = vsel %vm552, %v554, %v550
    %v556 = vmul.f32 1.0, %v555
    %v557 = vmul.f32 %v497, %v526
    %v558 = vmul.f32 %v498, %v541
    %v559 = vmul.f32 %v499, %v556
    %560 = vst [vmem:[#allocation3 + $0x1] sm:$0xff] %v491
    %561 = vst [vmem:[#allocation3 + $0x9] sm:$0xff] %v492
    %562 = vst [vmem:[#allocation3 + $0x11] sm:$0xfc] %v557
    %563 = vst [vmem:[#allocation3 + $0x19] sm:$0xff] %v558
    %564 = vst [vmem:[#allocation3 + $0x21] sm:$0x3] %v559
    %v565 = vld [vmem:[%s6] sm:$0x1]
    %v566 = vld [vmem:[%s7] sm:$0x1]
    %v567 = vld [vmem:[%s8] sm:$0x1]
    %v568 = vld [vmem:[#allocation3] sm:$0xff]
    %v569 = vld [vmem:[#allocation3 + $0x8] sm:$0xff]
    %v570 = vld [vmem:[#allocation3 + $0x10] sm:$0xff]
    %v571 = vld [vmem:[#allocation3 + $0x18] sm:$0xff]
    %v572 = vld [vmem:[#allocation3 + $0x20] sm:$0x3]
    %v573 = vpack.c.bf16 %v569, %v568
    %v574 = vpack.c.bf16 %v571, %v570
    %v575 = vpack.c.bf16 %v572, %v572
    %v576 = vld [vmem:[#allocation9] sm:$0xf]
    %v577 = vld [vmem:[#allocation9 + $0x4] sm:$0xf]
    %v578 = vld [vmem:[#allocation9 + $0x8] sm:$0xf]
    %v579 = vld [vmem:[#allocation9 + $0xc] sm:$0xf]
    %v580 = vld [vmem:[#allocation9 + $0x10] sm:$0xf]
    %v581 = vld [vmem:[#allocation9 + $0x14] sm:$0xf]
    %v582 = vld [vmem:[#allocation9 + $0x18] sm:$0xf]
    %v583 = vld [vmem:[#allocation9 + $0x1c] sm:$0xf]
    %v584 = vld [vmem:[#allocation9 + $0x20] sm:$0xf]
    %v585 = vld [vmem:[#allocation9 + $0x24] sm:$0xf]
    %v586 = vld [vmem:[#allocation9 + $0x28] sm:$0xf]
    %v587 = vld [vmem:[#allocation9 + $0x2c] sm:$0xf]
    %v588 = vld [vmem:[#allocation9 + $0x30] sm:$0xf]
    %v589 = vld [vmem:[#allocation9 + $0x34] sm:$0xf]
    %v590 = vld [vmem:[#allocation9 + $0x38] sm:$0xf]
    %v591 = vld [vmem:[#allocation9 + $0x3c] sm:$0xf]
    %v592 = vld [vmem:[#allocation3 + $0x1] sm:$0xff]
    %v593 = vld [vmem:[#allocation3 + $0x9] sm:$0xff]
    %v594 = vld [vmem:[#allocation3 + $0x11] sm:$0xff]
    %v595 = vld [vmem:[#allocation3 + $0x19] sm:$0xff]
    %v596 = vld [vmem:[#allocation3 + $0x21] sm:$0x3]
    %v597 = vpack.c.bf16 %v593, %v592
    %v598 = vpack.c.bf16 %v595, %v594
    %v599 = vpack.c.bf16 %v596, %v596
    %s600 = scalar_lea.vmem [#allocation9], 64
    %v601 = vld [vmem:[%s600] sm:$0xf]
    %v602 = vld [vmem:[%s600 + $0x4] sm:$0xf]
    %v603 = vld [vmem:[%s600 + $0x8] sm:$0xf]
    %v604 = vld [vmem:[%s600 + $0xc] sm:$0xf]
    %v605 = vld [vmem:[%s600 + $0x10] sm:$0xf]
    %v606 = vld [vmem:[%s600 + $0x14] sm:$0xf]
    %v607 = vld [vmem:[%s600 + $0x18] sm:$0xf]
    %v608 = vld [vmem:[%s600 + $0x1c] sm:$0xf]
    %v609 = vld [vmem:[%s600 + $0x20] sm:$0xf]
    %v610 = vld [vmem:[%s600 + $0x24] sm:$0xf]
    %v611 = vld [vmem:[%s600 + $0x28] sm:$0xf]
    %v612 = vld [vmem:[%s600 + $0x2c] sm:$0xf]
    %v613 = vld [vmem:[%s600 + $0x30] sm:$0xf]
    %v614 = vld [vmem:[%s600 + $0x34] sm:$0xf]
    %v615 = vld [vmem:[%s600 + $0x38] sm:$0xf]
    %v616 = vld [vmem:[%s600 + $0x3c] sm:$0xf]
    %v633 = vunpack.c.l.b16 %v601
    %v634 = vunpack.c.l.b16 %v602
    %v635 = vunpack.c.l.b16 %v603
    %v636 = vunpack.c.l.b16 %v604
    %v637 = vunpack.c.l.b16 %v605
    %v638 = vunpack.c.l.b16 %v606
    %v639 = vunpack.c.l.b16 %v607
    %v640 = vunpack.c.l.b16 %v608
    %v641 = vunpack.c.l.b16 %v609
    %v642 = vunpack.c.l.b16 %v610
    %v643 = vunpack.c.l.b16 %v611
    %v644 = vunpack.c.l.b16 %v612
    %v645 = vunpack.c.l.b16 %v613
    %v646 = vunpack.c.l.b16 %v614
    %v647 = vunpack.c.l.b16 %v615
    %v648 = vunpack.c.l.b16 %v616
    %v649 = vpack.c.b16 %v634, %v633
    %v650 = vpack.c.b16 %v636, %v635
    %v651 = vpack.c.b16 %v638, %v637
    %v652 = vpack.c.b16 %v640, %v639
    %v653 = vpack.c.b16 %v642, %v641
    %v654 = vpack.c.b16 %v644, %v643
    %v655 = vpack.c.b16 %v646, %v645
    %v656 = vpack.c.b16 %v648, %v647
    %665 = vmatpush.bf16.msra.mxu0 %v656
    %666 = vmatpush.bf16.msra.mxu0 %v655
    %667 = vmatpush.bf16.msra.mxu0 %v654
    %668 = vmatpush.bf16.msra.mxu0 %v653
    %669 = vmatpush.bf16.msra.mxu0 %v652
    %670 = vmatpush.bf16.msra.mxu0 %v651
    %671 = vmatpush.bf16.msra.mxu0 %v650
    %672 = vmatpush.bf16.msra.mxu0 %v649
    %673 = vmatmul.bf16.gmra.mxu0 %v597
    %v674 = vpop.f32.mrf.mxu0
    %v675 = vadd.f32 0.0, %v674
    %v676 = vpop.f32.mrf.mxu0
    %v677 = vadd.f32 0.0, %v676
    %678 = vmatmul.bf16.gmra.mxu0 %v598
    %v679 = vpop.f32.mrf.mxu0
    %v680 = vadd.f32 0.0, %v679
    %v681 = vpop.f32.mrf.mxu0
    %v682 = vadd.f32 0.0, %v681
    %683 = vmatmul.bf16.gmra.mxu0 %v599
    %v684 = vpop.f32.mrf.mxu0
    %v685 = vadd.f32 0.0, %v684
    %v686 = vpop.f32.mrf.mxu0
    %687 = vdwg.mxu0
    %v704 = vunpack.c.l.b16 %v576
    %v705 = vunpack.c.l.b16 %v577
    %v706 = vunpack.c.l.b16 %v578
    %v707 = vunpack.c.l.b16 %v579
    %v708 = vunpack.c.l.b16 %v580
    %v709 = vunpack.c.l.b16 %v581
    %v710 = vunpack.c.l.b16 %v582
    %v711 = vunpack.c.l.b16 %v583
    %v712 = vunpack.c.l.b16 %v584
    %v713 = vunpack.c.l.b16 %v585
    %v714 = vunpack.c.l.b16 %v586
    %v715 = vunpack.c.l.b16 %v587
    %v716 = vunpack.c.l.b16 %v588
    %v717 = vunpack.c.l.b16 %v589
    %v718 = vunpack.c.l.b16 %v590
    %v719 = vunpack.c.l.b16 %v591
    %v720 = vpack.c.b16 %v705, %v704
    %v721 = vpack.c.b16 %v707, %v706
    %v722 = vpack.c.b16 %v709, %v708
    %v723 = vpack.c.b16 %v711, %v710
    %v724 = vpack.c.b16 %v713, %v712
    %v725 = vpack.c.b16 %v715, %v714
    %v726 = vpack.c.b16 %v717, %v716
    %v727 = vpack.c.b16 %v719, %v718
    %736 = vmatpush.bf16.msra.mxu0 %v727
    %737 = vmatpush.bf16.msra.mxu0 %v726
    %738 = vmatpush.bf16.msra.mxu0 %v725
    %739 = vmatpush.bf16.msra.mxu0 %v724
    %740 = vmatpush.bf16.msra.mxu0 %v723
    %741 = vmatpush.bf16.msra.mxu0 %v722
    %742 = vmatpush.bf16.msra.mxu0 %v721
    %743 = vmatpush.bf16.msra.mxu0 %v720
    %744 = vmatmul.bf16.gmra.mxu0 %v573
    %v745 = vpop.f32.mrf.mxu0
    %v746 = vadd.f32 %v675, %v745
    %v747 = vpop.f32.mrf.mxu0
    %v748 = vadd.f32 %v677, %v747
    %749 = vmatmul.bf16.gmra.mxu0 %v574
    %v750 = vpop.f32.mrf.mxu0
    %v751 = vadd.f32 %v680, %v750
    %v752 = vpop.f32.mrf.mxu0
    %v753 = vadd.f32 %v682, %v752
    %754 = vmatmul.bf16.gmra.mxu0 %v575
    %v755 = vpop.f32.mrf.mxu0
    %v756 = vadd.f32 %v685, %v755
    %v757 = vpop.f32.mrf.mxu0
    %758 = vdwg.mxu0
    %v759 = vld [vmem:[#allocation3 + $0x2] sm:$0xff]
    %v760 = vld [vmem:[#allocation3 + $0xa] sm:$0xff]
    %v761 = vld [vmem:[#allocation3 + $0x12] sm:$0xff]
    %v762 = vld [vmem:[#allocation3 + $0x1a] sm:$0xff]
    %v763 = vld [vmem:[#allocation3 + $0x22] sm:$0x3]
    %v764 = vpack.c.bf16 %v760, %v759
    %v765 = vpack.c.bf16 %v762, %v761
    %v766 = vpack.c.bf16 %v763, %v763
    %s767 = scalar_lea.vmem [#allocation9], 128
    %v768 = vld [vmem:[%s767] sm:$0xf]
    %v769 = vld [vmem:[%s767 + $0x4] sm:$0xf]
    %v770 = vld [vmem:[%s767 + $0x8] sm:$0xf]
    %v771 = vld [vmem:[%s767 + $0xc] sm:$0xf]
    %v772 = vld [vmem:[%s767 + $0x10] sm:$0xf]
    %v773 = vld [vmem:[%s767 + $0x14] sm:$0xf]
    %v774 = vld [vmem:[%s767 + $0x18] sm:$0xf]
    %v775 = vld [vmem:[%s767 + $0x1c] sm:$0xf]
    %v776 = vld [vmem:[%s767 + $0x20] sm:$0xf]
    %v777 = vld [vmem:[%s767 + $0x24] sm:$0xf]
    %v778 = vld [vmem:[%s767 + $0x28] sm:$0xf]
    %v779 = vld [vmem:[%s767 + $0x2c] sm:$0xf]
    %v780 = vld [vmem:[%s767 + $0x30] sm:$0xf]
    %v781 = vld [vmem:[%s767 + $0x34] sm:$0xf]
    %v782 = vld [vmem:[%s767 + $0x38] sm:$0xf]
    %v783 = vld [vmem:[%s767 + $0x3c] sm:$0xf]
    %v800 = vunpack.c.l.b16 %v768
    %v801 = vunpack.c.l.b16 %v769
    %v802 = vunpack.c.l.b16 %v770
    %v803 = vunpack.c.l.b16 %v771
    %v804 = vunpack.c.l.b16 %v772
    %v805 = vunpack.c.l.b16 %v773
    %v806 = vunpack.c.l.b16 %v774
    %v807 = vunpack.c.l.b16 %v775
    %v808 = vunpack.c.l.b16 %v776
    %v809 = vunpack.c.l.b16 %v777
    %v810 = vunpack.c.l.b16 %v778
    %v811 = vunpack.c.l.b16 %v779
    %v812 = vunpack.c.l.b16 %v780
    %v813 = vunpack.c.l.b16 %v781
    %v814 = vunpack.c.l.b16 %v782
    %v815 = vunpack.c.l.b16 %v783
    %v816 = vpack.c.b16 %v801, %v800
    %v817 = vpack.c.b16 %v803, %v802
    %v818 = vpack.c.b16 %v805, %v804
    %v819 = vpack.c.b16 %v807, %v806
    %v820 = vpack.c.b16 %v809, %v808
    %v821 = vpack.c.b16 %v811, %v810
    %v822 = vpack.c.b16 %v813, %v812
    %v823 = vpack.c.b16 %v815, %v814
    %832 = vmatpush.bf16.msra.mxu0 %v823
    %833 = vmatpush.bf16.msra.mxu0 %v822
    %834 = vmatpush.bf16.msra.mxu0 %v821
    %835 = vmatpush.bf16.msra.mxu0 %v820
    %836 = vmatpush.bf16.msra.mxu0 %v819
    %837 = vmatpush.bf16.msra.mxu0 %v818
    %838 = vmatpush.bf16.msra.mxu0 %v817
    %839 = vmatpush.bf16.msra.mxu0 %v816
    %840 = vmatmul.bf16.gmra.mxu0 %v764
    %v841 = vpop.f32.mrf.mxu0
    %v842 = vadd.f32 0.0, %v841
    %v843 = vpop.f32.mrf.mxu0
    %v844 = vadd.f32 0.0, %v843
    %845 = vmatmul.bf16.gmra.mxu0 %v765
    %v846 = vpop.f32.mrf.mxu0
    %v847 = vadd.f32 0.0, %v846
    %v848 = vpop.f32.mrf.mxu0
    %v849 = vadd.f32 0.0, %v848
    %850 = vmatmul.bf16.gmra.mxu0 %v766
    %v851 = vpop.f32.mrf.mxu0
    %v852 = vadd.f32 0.0, %v851
    %v853 = vpop.f32.mrf.mxu0
    %854 = vdwg.mxu0
    %v855 = vadd.f32 %v746, %v842
    %v856 = vadd.f32 %v748, %v844
    %v857 = vadd.f32 %v751, %v847
    %v858 = vadd.f32 %v753, %v849
    %v859 = vadd.f32 %v756, %v852
    %v861 = vperm.slane %v565, 0
    %v863 = vadd.f32 %v855, %v861
    %v864 = vadd.f32 %v856, %v861
    %v865 = vadd.f32 %v857, %v861
    %v866 = vadd.f32 %v858, %v861
    %v867 = vadd.f32 %v859, %v861
    %v868 = vadd.f32 %v863, %v864
    %v869 = vrot.slane %v868, 4
    %v870 = vadd.f32 %v868, %v869
    %v871 = vrot.slane %v870, 2
    %v872 = vadd.f32 %v870, %v871
    %v873 = vrot.slane %v872, 1
    %v874 = vadd.f32 %v872, %v873
    %v878 = vrot.slane %v865, 2
    %v879 = vrot.slane %v866, 2
    %v880 = vsel %vm344, %v878, %v879
    %v881 = vrot.slane %v867, 2
    %v882 = vsel %vm344, %v879, %v881
    %v885 = vadd.f32 %v880, %v882
    %v886 = vrot.slane %v885, 4
    %v887 = vadd.f32 %v885, %v886
    %v888 = vrot.slane %v887, 2
    %v889 = vadd.f32 %v887, %v888
    %v890 = vrot.slane %v889, 1
    %v891 = vadd.f32 %v889, %v890
    %v892 = vsel %vm359, %v874, %v891
    %893 = vrot.lane.b32.xlu0 %v892, 4
    %v894 = vpop.permute.xlu0 %893
    %v895 = vadd.f32 %v892, %v894
    %896 = vrot.lane.b32.xlu0 %v895, 8
    %v897 = vpop.permute.xlu0 %896
    %v898 = vadd.f32 %v895, %v897
    %899 = vrot.lane.b32.xlu0 %v898, 16
    %v900 = vpop.permute.xlu0 %899
    %v901 = vadd.f32 %v898, %v900
    %902 = vrot.lane.b32.xlu0 %v901, 32
    %v903 = vpop.permute.xlu0 %902
    %v904 = vadd.f32 %v901, %v903
    %905 = vrot.lane.b32.xlu0 %v904, 64
    %v906 = vpop.permute.xlu0 %905
    %v907 = vadd.f32 %v904, %v906
    %v908 = vmul.f32 %v907, 0.001953125
    %v909 = vperm.slane %v908, 0
    %v910 = vsub.f32 %v863, %v909
    %v911 = vsub.f32 %v864, %v909
    %v912 = vperm.slane %v908, 1
    %v913 = vsub.f32 %v865, %v912
    %v914 = vsub.f32 %v866, %v912
    %v915 = vsub.f32 %v867, %v912
    %v916 = vmul.f32 %v910, %v910
    %v917 = vmul.f32 %v911, %v911
    %v918 = vadd.f32 %v916, %v917
    %v919 = vrot.slane %v918, 4
    %v920 = vadd.f32 %v918, %v919
    %v921 = vrot.slane %v920, 2
    %v922 = vadd.f32 %v920, %v921
    %v923 = vrot.slane %v922, 1
    %v924 = vadd.f32 %v922, %v923
    %v925 = vmul.f32 %v913, %v913
    %v926 = vmul.f32 %v914, %v914
    %v927 = vmul.f32 %v915, %v915
    %v931 = vrot.slane %v925, 2
    %v932 = vrot.slane %v926, 2
    %v933 = vsel %vm344, %v931, %v932
    %v934 = vrot.slane %v927, 2
    %v935 = vsel %vm344, %v932, %v934
    %v938 = vadd.f32 %v933, %v935
    %v939 = vrot.slane %v938, 4
    %v940 = vadd.f32 %v938, %v939
    %v941 = vrot.slane %v940, 2
    %v942 = vadd.f32 %v940, %v941
    %v943 = vrot.slane %v942, 1
    %v944 = vadd.f32 %v942, %v943
    %v945 = vsel %vm359, %v924, %v944
    %946 = vrot.lane.b32.xlu0 %v945, 4
    %v947 = vpop.permute.xlu0 %946
    %v948 = vadd.f32 %v945, %v947
    %949 = vrot.lane.b32.xlu0 %v948, 8
    %v950 = vpop.permute.xlu0 %949
    %v951 = vadd.f32 %v948, %v950
    %952 = vrot.lane.b32.xlu0 %v951, 16
    %v953 = vpop.permute.xlu0 %952
    %v954 = vadd.f32 %v951, %v953
    %955 = vrot.lane.b32.xlu0 %v954, 32
    %v956 = vpop.permute.xlu0 %955
    %v957 = vadd.f32 %v954, %v956
    %958 = vrot.lane.b32.xlu0 %v957, 64
    %v959 = vpop.permute.xlu0 %958
    %v960 = vadd.f32 %v957, %v959
    %v961 = vmul.f32 %v960, 0.001953125
    %v962 = vadd.f32 %v961, 1e-05
    %v963 = vrsqrt.pop %v962
    %v964 = vmul.f32 %v963, %v962
    %v965 = vmul.f32 %v964, %v963
    %v966 = vmul.f32 0.5, %v965
    %v967 = vsub.f32 1.5, %v966
    %v968 = vmul.f32 %v963, %v967
    %vm969 = vweird.f32 %v962
    %vm970 = vweird.f32 %v963
    %vm971 = vmor %vm969, %vm970
    %v972 = vsel %vm971, %v963, %v968
    %v974 = vperm.slane %v566, 0
    %v976 = vmul.f32 %v972, %v974
    %v977 = vperm.slane %v976, 0
    %v978 = vmul.f32 %v910, %v977
    %v979 = vmul.f32 %v911, %v977
    %v981 = vperm.slane %v567, 0
    %v983 = vadd.f32 %v978, %v981
    %v984 = vadd.f32 %v979, %v981
    %v985 = vxor.u32 %v983, 2147483648
    %v986 = vxor.u32 %v984, 2147483648
    %v987 = vmul.f32 %v985, 1.442695
    %v988 = vpow.pop %v987
    %v989 = vmul.f32 %v986, 1.442695
    %v990 = vpow.pop %v989
    %v991 = vadd.f32 %v988, 1.0
    %v992 = vadd.f32 %v990, 1.0
    %v993 = vrcp.pop %v991
    %v994 = vmul.f32 %v991, %v993
    %v995 = vsub.f32 1.0, %v994
    %v996 = vmul.f32 %v993, %v995
    %v997 = vadd.f32 %v993, %v996
    %vm998 = vweird.f32 %v991
    %vm999 = vweird.f32 %v993
    %vm1000 = vmor %vm998, %vm999
    %v1001 = vsel %vm1000, %v993, %v997
    %v1002 = vand.u32 2147483647, %v991
    %vm1003 = vcmp.eq.f32.partialorder %v1002, 8.507059e+37
    %v1004 = vand.u32 %v991, 2147483648
    %v1005 = vor.u32 1.1754944e-38, %v1004
    %v1006 = vsel %vm1003, %v1005, %v1001
    %v1007 = vmul.f32 1.0, %v1006
    %v1008 = vrcp.pop %v992
    %v1009 = vmul.f32 %v992, %v1008
    %v1010 = vsub.f32 1.0, %v1009
    %v1011 = vmul.f32 %v1008, %v1010
    %v1012 = vadd.f32 %v1008, %v1011
    %vm1013 = vweird.f32 %v992
    %vm1014 = vweird.f32 %v1008
    %vm1015 = vmor %vm1013, %vm1014
    %v1016 = vsel %vm1015, %v1008, %v1012
    %v1017 = vand.u32 2147483647, %v992
    %vm1018 = vcmp.eq.f32.partialorder %v1017, 8.507059e+37
    %v1019 = vand.u32 %v992, 2147483648
    %v1020 = vor.u32 1.1754944e-38, %v1019
    %v1021 = vsel %vm1018, %v1020, %v1016
    %v1022 = vmul.f32 1.0, %v1021
    %v1023 = vmul.f32 %v983, %v1007
    %v1024 = vmul.f32 %v984, %v1022
    %v1025 = vperm.slane %v976, 1
    %v1026 = vmul.f32 %v913, %v1025
    %v1027 = vmul.f32 %v914, %v1025
    %v1028 = vmul.f32 %v915, %v1025
    %v1029 = vadd.f32 %v1026, %v981
    %v1030 = vadd.f32 %v1027, %v981
    %v1031 = vadd.f32 %v1028, %v981
    %v1032 = vxor.u32 %v1029, 2147483648
    %v1033 = vxor.u32 %v1030, 2147483648
    %v1034 = vxor.u32 %v1031, 2147483648
    %v1035 = vmul.f32 %v1032, 1.442695
    %v1036 = vpow.pop %v1035
    %v1037 = vmul.f32 %v1033, 1.442695
    %v1038 = vpow.pop %v1037
    %v1039 = vmul.f32 %v1034, 1.442695
    %v1040 = vpow.pop %v1039
    %v1041 = vadd.f32 %v1036, 1.0
    %v1042 = vadd.f32 %v1038, 1.0
    %v1043 = vadd.f32 %v1040, 1.0
    %v1044 = vrcp.pop %v1041
    %v1045 = vmul.f32 %v1041, %v1044
    %v1046 = vsub.f32 1.0, %v1045
    %v1047 = vmul.f32 %v1044, %v1046
    %v1048 = vadd.f32 %v1044, %v1047
    %vm1049 = vweird.f32 %v1041
    %vm1050 = vweird.f32 %v1044
    %vm1051 = vmor %vm1049, %vm1050
    %v1052 = vsel %vm1051, %v1044, %v1048
    %v1053 = vand.u32 2147483647, %v1041
    %vm1054 = vcmp.eq.f32.partialorder %v1053, 8.507059e+37
    %v1055 = vand.u32 %v1041, 2147483648
    %v1056 = vor.u32 1.1754944e-38, %v1055
    %v1057 = vsel %vm1054, %v1056, %v1052
    %v1058 = vmul.f32 1.0, %v1057
    %v1059 = vrcp.pop %v1042
    %v1060 = vmul.f32 %v1042, %v1059
    %v1061 = vsub.f32 1.0, %v1060
    %v1062 = vmul.f32 %v1059, %v1061
    %v1063 = vadd.f32 %v1059, %v1062
    %vm1064 = vweird.f32 %v1042
    %vm1065 = vweird.f32 %v1059
    %vm1066 = vmor %vm1064, %vm1065
    %v1067 = vsel %vm1066, %v1059, %v1063
    %v1068 = vand.u32 2147483647, %v1042
    %vm1069 = vcmp.eq.f32.partialorder %v1068, 8.507059e+37
    %v1070 = vand.u32 %v1042, 2147483648
    %v1071 = vor.u32 1.1754944e-38, %v1070
    %v1072 = vsel %vm1069, %v1071, %v1067
    %v1073 = vmul.f32 1.0, %v1072
    %v1074 = vrcp.pop %v1043
    %v1075 = vmul.f32 %v1043, %v1074
    %v1076 = vsub.f32 1.0, %v1075
    %v1077 = vmul.f32 %v1074, %v1076
    %v1078 = vadd.f32 %v1074, %v1077
    %vm1079 = vweird.f32 %v1043
    %vm1080 = vweird.f32 %v1074
    %vm1081 = vmor %vm1079, %vm1080
    %v1082 = vsel %vm1081, %v1074, %v1078
    %v1083 = vand.u32 2147483647, %v1043
    %vm1084 = vcmp.eq.f32.partialorder %v1083, 8.507059e+37
    %v1085 = vand.u32 %v1043, 2147483648
    %v1086 = vor.u32 1.1754944e-38, %v1085
    %v1087 = vsel %vm1084, %v1086, %v1082
    %v1088 = vmul.f32 1.0, %v1087
    %v1089 = vmul.f32 %v1029, %v1058
    %v1090 = vmul.f32 %v1030, %v1073
    %v1091 = vmul.f32 %v1031, %v1088
    %1092 = vst [vmem:[#allocation3 + $0x1] sm:$0xff] %v1023
    %1093 = vst [vmem:[#allocation3 + $0x9] sm:$0xff] %v1024
    %1094 = vst [vmem:[#allocation3 + $0x11] sm:$0xfc] %v1089
    %1095 = vst [vmem:[#allocation3 + $0x19] sm:$0xff] %v1090
    %1096 = vst [vmem:[#allocation3 + $0x21] sm:$0x3] %v1091
    %v1097 = vld [vmem:[%s6] sm:$0x1]
    %v1098 = vld [vmem:[%s7] sm:$0x1]
    %v1099 = vld [vmem:[%s8] sm:$0x1]
    %v1100 = vld [vmem:[#allocation3] sm:$0xff]
    %v1101 = vld [vmem:[#allocation3 + $0x8] sm:$0xff]
    %v1102 = vld [vmem:[#allocation3 + $0x10] sm:$0xff]
    %v1103 = vld [vmem:[#allocation3 + $0x18] sm:$0xff]
    %v1104 = vld [vmem:[#allocation3 + $0x20] sm:$0x3]
    %v1105 = vpack.c.bf16 %v1101, %v1100
    %v1106 = vpack.c.bf16 %v1103, %v1102
    %v1107 = vpack.c.bf16 %v1104, %v1104
    %v1108 = vld [vmem:[#allocation9] sm:$0xf]
    %v1109 = vld [vmem:[#allocation9 + $0x4] sm:$0xf]
    %v1110 = vld [vmem:[#allocation9 + $0x8] sm:$0xf]
    %v1111 = vld [vmem:[#allocation9 + $0xc] sm:$0xf]
    %v1112 = vld [vmem:[#allocation9 + $0x10] sm:$0xf]
    %v1113 = vld [vmem:[#allocation9 + $0x14] sm:$0xf]
    %v1114 = vld [vmem:[#allocation9 + $0x18] sm:$0xf]
    %v1115 = vld [vmem:[#allocation9 + $0x1c] sm:$0xf]
    %v1116 = vld [vmem:[#allocation9 + $0x20] sm:$0xf]
    %v1117 = vld [vmem:[#allocation9 + $0x24] sm:$0xf]
    %v1118 = vld [vmem:[#allocation9 + $0x28] sm:$0xf]
    %v1119 = vld [vmem:[#allocation9 + $0x2c] sm:$0xf]
    %v1120 = vld [vmem:[#allocation9 + $0x30] sm:$0xf]
    %v1121 = vld [vmem:[#allocation9 + $0x34] sm:$0xf]
    %v1122 = vld [vmem:[#allocation9 + $0x38] sm:$0xf]
    %v1123 = vld [vmem:[#allocation9 + $0x3c] sm:$0xf]
    %v1124 = vld [vmem:[#allocation3 + $0x1] sm:$0xff]
    %v1125 = vld [vmem:[#allocation3 + $0x9] sm:$0xff]
    %v1126 = vld [vmem:[#allocation3 + $0x11] sm:$0xff]
    %v1127 = vld [vmem:[#allocation3 + $0x19] sm:$0xff]
    %v1128 = vld [vmem:[#allocation3 + $0x21] sm:$0x3]
    %v1129 = vpack.c.bf16 %v1125, %v1124
    %v1130 = vpack.c.bf16 %v1127, %v1126
    %v1131 = vpack.c.bf16 %v1128, %v1128
    %v1132 = vld [vmem:[%s600] sm:$0xf]
    %v1133 = vld [vmem:[%s600 + $0x4] sm:$0xf]
    %v1134 = vld [vmem:[%s600 + $0x8] sm:$0xf]
    %v1135 = vld [vmem:[%s600 + $0xc] sm:$0xf]
    %v1136 = vld [vmem:[%s600 + $0x10] sm:$0xf]
    %v1137 = vld [vmem:[%s600 + $0x14] sm:$0xf]
    %v1138 = vld [vmem:[%s600 + $0x18] sm:$0xf]
    %v1139 = vld [vmem:[%s600 + $0x1c] sm:$0xf]
    %v1140 = vld [vmem:[%s600 + $0x20] sm:$0xf]
    %v1141 = vld [vmem:[%s600 + $0x24] sm:$0xf]
    %v1142 = vld [vmem:[%s600 + $0x28] sm:$0xf]
    %v1143 = vld [vmem:[%s600 + $0x2c] sm:$0xf]
    %v1144 = vld [vmem:[%s600 + $0x30] sm:$0xf]
    %v1145 = vld [vmem:[%s600 + $0x34] sm:$0xf]
    %v1146 = vld [vmem:[%s600 + $0x38] sm:$0xf]
    %v1147 = vld [vmem:[%s600 + $0x3c] sm:$0xf]
    %v1164 = vunpack.c.l.b16 %v1132
    %v1165 = vunpack.c.l.b16 %v1133
    %v1166 = vunpack.c.l.b16 %v1134
    %v1167 = vunpack.c.l.b16 %v1135
    %v1168 = vunpack.c.l.b16 %v1136
    %v1169 = vunpack.c.l.b16 %v1137
    %v1170 = vunpack.c.l.b16 %v1138
    %v1171 = vunpack.c.l.b16 %v1139
    %v1172 = vunpack.c.l.b16 %v1140
    %v1173 = vunpack.c.l.b16 %v1141
    %v1174 = vunpack.c.l.b16 %v1142
    %v1175 = vunpack.c.l.b16 %v1143
    %v1176 = vunpack.c.l.b16 %v1144
    %v1177 = vunpack.c.l.b16 %v1145
    %v1178 = vunpack.c.l.b16 %v1146
    %v1179 = vunpack.c.l.b16 %v1147
    %v1180 = vpack.c.b16 %v1165, %v1164
    %v1181 = vpack.c.b16 %v1167, %v1166
    %v1182 = vpack.c.b16 %v1169, %v1168
    %v1183 = vpack.c.b16 %v1171, %v1170
    %v1184 = vpack.c.b16 %v1173, %v1172
    %v1185 = vpack.c.b16 %v1175, %v1174
    %v1186 = vpack.c.b16 %v1177, %v1176
    %v1187 = vpack.c.b16 %v1179, %v1178
    %1196 = vmatpush.bf16.msra.mxu0 %v1187
    %1197 = vmatpush.bf16.msra.mxu0 %v1186
    %1198 = vmatpush.bf16.msra.mxu0 %v1185
    %1199 = vmatpush.bf16.msra.mxu0 %v1184
    %1200 = vmatpush.bf16.msra.mxu0 %v1183
    %1201 = vmatpush.bf16.msra.mxu0 %v1182
    %1202 = vmatpush.bf16.msra.mxu0 %v1181
    %1203 = vmatpush.bf16.msra.mxu0 %v1180
    %1204 = vmatmul.bf16.gmra.mxu0 %v1129
    %v1205 = vpop.f32.mrf.mxu0
    %v1206 = vadd.f32 0.0, %v1205
    %v1207 = vpop.f32.mrf.mxu0
    %v1208 = vadd.f32 0.0, %v1207
    %1209 = vmatmul.bf16.gmra.mxu0 %v1130
    %v1210 = vpop.f32.mrf.mxu0
    %v1211 = vadd.f32 0.0, %v1210
    %v1212 = vpop.f32.mrf.mxu0
    %v1213 = vadd.f32 0.0, %v1212
    %1214 = vmatmul.bf16.gmra.mxu0 %v1131
    %v1215 = vpop.f32.mrf.mxu0
    %v1216 = vadd.f32 0.0, %v1215
    %v1217 = vpop.f32.mrf.mxu0
    %1218 = vdwg.mxu0
    %v1235 = vunpack.c.l.b16 %v1108
    %v1236 = vunpack.c.l.b16 %v1109
    %v1237 = vunpack.c.l.b16 %v1110
    %v1238 = vunpack.c.l.b16 %v1111
    %v1239 = vunpack.c.l.b16 %v1112
    %v1240 = vunpack.c.l.b16 %v1113
    %v1241 = vunpack.c.l.b16 %v1114
    %v1242 = vunpack.c.l.b16 %v1115
    %v1243 = vunpack.c.l.b16 %v1116
    %v1244 = vunpack.c.l.b16 %v1117
    %v1245 = vunpack.c.l.b16 %v1118
    %v1246 = vunpack.c.l.b16 %v1119
    %v1247 = vunpack.c.l.b16 %v1120
    %v1248 = vunpack.c.l.b16 %v1121
    %v1249 = vunpack.c.l.b16 %v1122
    %v1250 = vunpack.c.l.b16 %v1123
    %v1251 = vpack.c.b16 %v1236, %v1235
    %v1252 = vpack.c.b16 %v1238, %v1237
    %v1253 = vpack.c.b16 %v1240, %v1239
    %v1254 = vpack.c.b16 %v1242, %v1241
    %v1255 = vpack.c.b16 %v1244, %v1243
    %v1256 = vpack.c.b16 %v1246, %v1245
    %v1257 = vpack.c.b16 %v1248, %v1247
    %v1258 = vpack.c.b16 %v1250, %v1249
    %1267 = vmatpush.bf16.msra.mxu0 %v1258
    %1268 = vmatpush.bf16.msra.mxu0 %v1257
    %1269 = vmatpush.bf16.msra.mxu0 %v1256
    %1270 = vmatpush.bf16.msra.mxu0 %v1255
    %1271 = vmatpush.bf16.msra.mxu0 %v1254
    %1272 = vmatpush.bf16.msra.mxu0 %v1253
    %1273 = vmatpush.bf16.msra.mxu0 %v1252
    %1274 = vmatpush.bf16.msra.mxu0 %v1251
    %1275 = vmatmul.bf16.gmra.mxu0 %v1105
    %v1276 = vpop.f32.mrf.mxu0
    %v1277 = vadd.f32 %v1206, %v1276
    %v1278 = vpop.f32.mrf.mxu0
    %v1279 = vadd.f32 %v1208, %v1278
    %1280 = vmatmul.bf16.gmra.mxu0 %v1106
    %v1281 = vpop.f32.mrf.mxu0
    %v1282 = vadd.f32 %v1211, %v1281
    %v1283 = vpop.f32.mrf.mxu0
    %v1284 = vadd.f32 %v1213, %v1283
    %1285 = vmatmul.bf16.gmra.mxu0 %v1107
    %v1286 = vpop.f32.mrf.mxu0
    %v1287 = vadd.f32 %v1216, %v1286
    %v1288 = vpop.f32.mrf.mxu0
    %1289 = vdwg.mxu0
    %v1290 = vld [vmem:[#allocation3 + $0x2] sm:$0xff]
    %v1291 = vld [vmem:[#allocation3 + $0xa] sm:$0xff]
    %v1292 = vld [vmem:[#allocation3 + $0x12] sm:$0xff]
    %v1293 = vld [vmem:[#allocation3 + $0x1a] sm:$0xff]
    %v1294 = vld [vmem:[#allocation3 + $0x22] sm:$0x3]
    %v1295 = vpack.c.bf16 %v1291, %v1290
    %v1296 = vpack.c.bf16 %v1293, %v1292
    %v1297 = vpack.c.bf16 %v1294, %v1294
    %v1298 = vld [vmem:[%s767] sm:$0xf]
    %v1299 = vld [vmem:[%s767 + $0x4] sm:$0xf]
    %v1300 = vld [vmem:[%s767 + $0x8] sm:$0xf]
    %v1301 = vld [vmem:[%s767 + $0xc] sm:$0xf]
    %v1302 = vld [vmem:[%s767 + $0x10] sm:$0xf]
    %v1303 = vld [vmem:[%s767 + $0x14] sm:$0xf]
    %v1304 = vld [vmem:[%s767 + $0x18] sm:$0xf]
    %v1305 = vld [vmem:[%s767 + $0x1c] sm:$0xf]
    %v1306 = vld [vmem:[%s767 + $0x20] sm:$0xf]
    %v1307 = vld [vmem:[%s767 + $0x24] sm:$0xf]
    %v1308 = vld [vmem:[%s767 + $0x28] sm:$0xf]
    %v1309 = vld [vmem:[%s767 + $0x2c] sm:$0xf]
    %v1310 = vld [vmem:[%s767 + $0x30] sm:$0xf]
    %v1311 = vld [vmem:[%s767 + $0x34] sm:$0xf]
    %v1312 = vld [vmem:[%s767 + $0x38] sm:$0xf]
    %v1313 = vld [vmem:[%s767 + $0x3c] sm:$0xf]
    %v1330 = vunpack.c.l.b16 %v1298
    %v1331 = vunpack.c.l.b16 %v1299
    %v1332 = vunpack.c.l.b16 %v1300
    %v1333 = vunpack.c.l.b16 %v1301
    %v1334 = vunpack.c.l.b16 %v1302
    %v1335 = vunpack.c.l.b16 %v1303
    %v1336 = vunpack.c.l.b16 %v1304
    %v1337 = vunpack.c.l.b16 %v1305
    %v1338 = vunpack.c.l.b16 %v1306
    %v1339 = vunpack.c.l.b16 %v1307
    %v1340 = vunpack.c.l.b16 %v1308
    %v1341 = vunpack.c.l.b16 %v1309
    %v1342 = vunpack.c.l.b16 %v1310
    %v1343 = vunpack.c.l.b16 %v1311
    %v1344 = vunpack.c.l.b16 %v1312
    %v1345 = vunpack.c.l.b16 %v1313
    %v1346 = vpack.c.b16 %v1331, %v1330
    %v1347 = vpack.c.b16 %v1333, %v1332
    %v1348 = vpack.c.b16 %v1335, %v1334
    %v1349 = vpack.c.b16 %v1337, %v1336
    %v1350 = vpack.c.b16 %v1339, %v1338
    %v1351 = vpack.c.b16 %v1341, %v1340
    %v1352 = vpack.c.b16 %v1343, %v1342
    %v1353 = vpack.c.b16 %v1345, %v1344
    %1362 = vmatpush.bf16.msra.mxu0 %v1353
    %1363 = vmatpush.bf16.msra.mxu0 %v1352
    %1364 = vmatpush.bf16.msra.mxu0 %v1351
    %1365 = vmatpush.bf16.msra.mxu0 %v1350
    %1366 = vmatpush.bf16.msra.mxu0 %v1349
    %1367 = vmatpush.bf16.msra.mxu0 %v1348
    %1368 = vmatpush.bf16.msra.mxu0 %v1347
    %1369 = vmatpush.bf16.msra.mxu0 %v1346
    %1370 = vmatmul.bf16.gmra.mxu0 %v1295
    %v1371 = vpop.f32.mrf.mxu0
    %v1372 = vadd.f32 0.0, %v1371
    %v1373 = vpop.f32.mrf.mxu0
    %v1374 = vadd.f32 0.0, %v1373
    %1375 = vmatmul.bf16.gmra.mxu0 %v1296
    %v1376 = vpop.f32.mrf.mxu0
    %v1377 = vadd.f32 0.0, %v1376
    %v1378 = vpop.f32.mrf.mxu0
    %v1379 = vadd.f32 0.0, %v1378
    %1380 = vmatmul.bf16.gmra.mxu0 %v1297
    %v1381 = vpop.f32.mrf.mxu0
    %v1382 = vadd.f32 0.0, %v1381
    %v1383 = vpop.f32.mrf.mxu0
    %1384 = vdwg.mxu0
    %v1385 = vadd.f32 %v1277, %v1372
    %v1386 = vadd.f32 %v1279, %v1374
    %v1387 = vadd.f32 %v1282, %v1377
    %v1388 = vadd.f32 %v1284, %v1379
    %v1389 = vadd.f32 %v1287, %v1382
    %v1391 = vperm.slane %v1097, 0
    %v1393 = vadd.f32 %v1385, %v1391
    %v1394 = vadd.f32 %v1386, %v1391
    %v1395 = vadd.f32 %v1387, %v1391
    %v1396 = vadd.f32 %v1388, %v1391
    %v1397 = vadd.f32 %v1389, %v1391
    %v1398 = vadd.f32 %v1393, %v1394
    %v1399 = vrot.slane %v1398, 4
    %v1400 = vadd.f32 %v1398, %v1399
    %v1401 = vrot.slane %v1400, 2
    %v1402 = vadd.f32 %v1400, %v1401
    %v1403 = vrot.slane %v1402, 1
    %v1404 = vadd.f32 %v1402, %v1403
    %v1408 = vrot.slane %v1395, 2
    %v1409 = vrot.slane %v1396, 2
    %v1410 = vsel %vm344, %v1408, %v1409
    %v1411 = vrot.slane %v1397, 2
    %v1412 = vsel %vm344, %v1409, %v1411
    %v1415 = vadd.f32 %v1410, %v1412
    %v1416 = vrot.slane %v1415, 4
    %v1417 = vadd.f32 %v1415, %v1416
    %v1418 = vrot.slane %v1417, 2
    %v1419 = vadd.f32 %v1417, %v1418
    %v1420 = vrot.slane %v1419, 1
    %v1421 = vadd.f32 %v1419, %v1420
    %v1422 = vsel %vm359, %v1404, %v1421
    %1423 = vrot.lane.b32.xlu0 %v1422, 4
    %v1424 = vpop.permute.xlu0 %1423
    %v1425 = vadd.f32 %v1422, %v1424
    %1426 = vrot.lane.b32.xlu0 %v1425, 8
    %v1427 = vpop.permute.xlu0 %1426
    %v1428 = vadd.f32 %v1425, %v1427
    %1429 = vrot.lane.b32.xlu0 %v1428, 16
    %v1430 = vpop.permute.xlu0 %1429
    %v1431 = vadd.f32 %v1428, %v1430
    %1432 = vrot.lane.b32.xlu0 %v1431, 32
    %v1433 = vpop.permute.xlu0 %1432
    %v1434 = vadd.f32 %v1431, %v1433
    %1435 = vrot.lane.b32.xlu0 %v1434, 64
    %v1436 = vpop.permute.xlu0 %1435
    %v1437 = vadd.f32 %v1434, %v1436
    %v1438 = vmul.f32 %v1437, 0.001953125
    %v1439 = vperm.slane %v1438, 0
    %v1440 = vsub.f32 %v1393, %v1439
    %v1441 = vsub.f32 %v1394, %v1439
    %v1442 = vperm.slane %v1438, 1
    %v1443 = vsub.f32 %v1395, %v1442
    %v1444 = vsub.f32 %v1396, %v1442
    %v1445 = vsub.f32 %v1397, %v1442
    %v1446 = vmul.f32 %v1440, %v1440
    %v1447 = vmul.f32 %v1441, %v1441
    %v1448 = vadd.f32 %v1446, %v1447
    %v1449 = vrot.slane %v1448, 4
    %v1450 = vadd.f32 %v1448, %v1449
    %v1451 = vrot.slane %v1450, 2
    %v1452 = vadd.f32 %v1450, %v1451
    %v1453 = vrot.slane %v1452, 1
    %v1454 = vadd.f32 %v1452, %v1453
    %v1455 = vmul.f32 %v1443, %v1443
    %v1456 = vmul.f32 %v1444, %v1444
    %v1457 = vmul.f32 %v1445, %v1445
    %v1461 = vrot.slane %v1455, 2
    %v1462 = vrot.slane %v1456, 2
    %v1463 = vsel %vm344, %v1461, %v1462
    %v1464 = vrot.slane %v1457, 2
    %v1465 = vsel %vm344, %v1462, %v1464
    %v1468 = vadd.f32 %v1463, %v1465
    %v1469 = vrot.slane %v1468, 4
    %v1470 = vadd.f32 %v1468, %v1469
    %v1471 = vrot.slane %v1470, 2
    %v1472 = vadd.f32 %v1470, %v1471
    %v1473 = vrot.slane %v1472, 1
    %v1474 = vadd.f32 %v1472, %v1473
    %v1475 = vsel %vm359, %v1454, %v1474
    %1476 = vrot.lane.b32.xlu0 %v1475, 4
    %v1477 = vpop.permute.xlu0 %1476
    %v1478 = vadd.f32 %v1475, %v1477
    %1479 = vrot.lane.b32.xlu0 %v1478, 8
    %v1480 = vpop.permute.xlu0 %1479
    %v1481 = vadd.f32 %v1478, %v1480
    %1482 = vrot.lane.b32.xlu0 %v1481, 16
    %v1483 = vpop.permute.xlu0 %1482
    %v1484 = vadd.f32 %v1481, %v1483
    %1485 = vrot.lane.b32.xlu0 %v1484, 32
    %v1486 = vpop.permute.xlu0 %1485
    %v1487 = vadd.f32 %v1484, %v1486
    %1488 = vrot.lane.b32.xlu0 %v1487, 64
    %v1489 = vpop.permute.xlu0 %1488
    %v1490 = vadd.f32 %v1487, %v1489
    %v1491 = vmul.f32 %v1490, 0.001953125
    %v1492 = vadd.f32 %v1491, 1e-05
    %v1493 = vrsqrt.pop %v1492
    %v1494 = vmul.f32 %v1493, %v1492
    %v1495 = vmul.f32 %v1494, %v1493
    %v1496 = vmul.f32 0.5, %v1495
    %v1497 = vsub.f32 1.5, %v1496
    %v1498 = vmul.f32 %v1493, %v1497
    %vm1499 = vweird.f32 %v1492
    %vm1500 = vweird.f32 %v1493
    %vm1501 = vmor %vm1499, %vm1500
    %v1502 = vsel %vm1501, %v1493, %v1498
    %v1504 = vperm.slane %v1098, 0
    %v1506 = vmul.f32 %v1502, %v1504
    %v1507 = vperm.slane %v1506, 0
    %v1508 = vmul.f32 %v1440, %v1507
    %v1509 = vmul.f32 %v1441, %v1507
    %v1511 = vperm.slane %v1099, 0
    %v1513 = vadd.f32 %v1508, %v1511
    %v1514 = vadd.f32 %v1509, %v1511
    %v1515 = vxor.u32 %v1513, 2147483648
    %v1516 = vxor.u32 %v1514, 2147483648
    %v1517 = vmul.f32 %v1515, 1.442695
    %v1518 = vpow.pop %v1517
    %v1519 = vmul.f32 %v1516, 1.442695
    %v1520 = vpow.pop %v1519
    %v1521 = vadd.f32 %v1518, 1.0
    %v1522 = vadd.f32 %v1520, 1.0
    %v1523 = vrcp.pop %v1521
    %v1524 = vmul.f32 %v1521, %v1523
    %v1525 = vsub.f32 1.0, %v1524
    %v1526 = vmul.f32 %v1523, %v1525
    %v1527 = vadd.f32 %v1523, %v1526
    %vm1528 = vweird.f32 %v1521
    %vm1529 = vweird.f32 %v1523
    %vm1530 = vmor %vm1528, %vm1529
    %v1531 = vsel %vm1530, %v1523, %v1527
    %v1532 = vand.u32 2147483647, %v1521
    %vm1533 = vcmp.eq.f32.partialorder %v1532, 8.507059e+37
    %v1534 = vand.u32 %v1521, 2147483648
    %v1535 = vor.u32 1.1754944e-38, %v1534
    %v1536 = vsel %vm1533, %v1535, %v1531
    %v1537 = vmul.f32 1.0, %v1536
    %v1538 = vrcp.pop %v1522
    %v1539 = vmul.f32 %v1522, %v1538
    %v1540 = vsub.f32 1.0, %v1539
    %v1541 = vmul.f32 %v1538, %v1540
    %v1542 = vadd.f32 %v1538, %v1541
    %vm1543 = vweird.f32 %v1522
    %vm1544 = vweird.f32 %v1538
    %vm1545 = vmor %vm1543, %vm1544
    %v1546 = vsel %vm1545, %v1538, %v1542
    %v1547 = vand.u32 2147483647, %v1522
    %vm1548 = vcmp.eq.f32.partialorder %v1547, 8.507059e+37
    %v1549 = vand.u32 %v1522, 2147483648
    %v1550 = vor.u32 1.1754944e-38, %v1549
    %v1551 = vsel %vm1548, %v1550, %v1546
    %v1552 = vmul.f32 1.0, %v1551
    %v1553 = vmul.f32 %v1513, %v1537
    %v1554 = vmul.f32 %v1514, %v1552
    %v1555 = vperm.slane %v1506, 1
    %v1556 = vmul.f32 %v1443, %v1555
    %v1557 = vmul.f32 %v1444, %v1555
    %v1558 = vmul.f32 %v1445, %v1555
    %v1559 = vadd.f32 %v1556, %v1511
    %v1560 = vadd.f32 %v1557, %v1511
    %v1561 = vadd.f32 %v1558, %v1511
    %v1562 = vxor.u32 %v1559, 2147483648
    %v1563 = vxor.u32 %v1560, 2147483648
    %v1564 = vxor.u32 %v1561, 2147483648
    %v1565 = vmul.f32 %v1562, 1.442695
    %v1566 = vpow.pop %v1565
    %v1567 = vmul.f32 %v1563, 1.442695
    %v1568 = vpow.pop %v1567
    %v1569 = vmul.f32 %v1564, 1.442695
    %v1570 = vpow.pop %v1569
    %v1571 = vadd.f32 %v1566, 1.0
    %v1572 = vadd.f32 %v1568, 1.0
    %v1573 = vadd.f32 %v1570, 1.0
    %v1574 = vrcp.pop %v1571
    %v1575 = vmul.f32 %v1571, %v1574
    %v1576 = vsub.f32 1.0, %v1575
    %v1577 = vmul.f32 %v1574, %v1576
    %v1578 = vadd.f32 %v1574, %v1577
    %vm1579 = vweird.f32 %v1571
    %vm1580 = vweird.f32 %v1574
    %vm1581 = vmor %vm1579, %vm1580
    %v1582 = vsel %vm1581, %v1574, %v1578
    %v1583 = vand.u32 2147483647, %v1571
    %vm1584 = vcmp.eq.f32.partialorder %v1583, 8.507059e+37
    %v1585 = vand.u32 %v1571, 2147483648
    %v1586 = vor.u32 1.1754944e-38, %v1585
    %v1587 = vsel %vm1584, %v1586, %v1582
    %v1588 = vmul.f32 1.0, %v1587
    %v1589 = vrcp.pop %v1572
    %v1590 = vmul.f32 %v1572, %v1589
    %v1591 = vsub.f32 1.0, %v1590
    %v1592 = vmul.f32 %v1589, %v1591
    %v1593 = vadd.f32 %v1589, %v1592
    %vm1594 = vweird.f32 %v1572
    %vm1595 = vweird.f32 %v1589
    %vm1596 = vmor %vm1594, %vm1595
    %v1597 = vsel %vm1596, %v1589, %v1593
    %v1598 = vand.u32 2147483647, %v1572
    %vm1599 = vcmp.eq.f32.partialorder %v1598, 8.507059e+37
    %v1600 = vand.u32 %v1572, 2147483648
    %v1601 = vor.u32 1.1754944e-38, %v1600
    %v1602 = vsel %vm1599, %v1601, %v1597
    %v1603 = vmul.f32 1.0, %v1602
    %v1604 = vrcp.pop %v1573
    %v1605 = vmul.f32 %v1573, %v1604
    %v1606 = vsub.f32 1.0, %v1605
    %v1607 = vmul.f32 %v1604, %v1606
    %v1608 = vadd.f32 %v1604, %v1607
    %vm1609 = vweird.f32 %v1573
    %vm1610 = vweird.f32 %v1604
    %vm1611 = vmor %vm1609, %vm1610
    %v1612 = vsel %vm1611, %v1604, %v1608
    %v1613 = vand.u32 2147483647, %v1573
    %vm1614 = vcmp.eq.f32.partialorder %v1613, 8.507059e+37
    %v1615 = vand.u32 %v1573, 2147483648
    %v1616 = vor.u32 1.1754944e-38, %v1615
    %v1617 = vsel %vm1614, %v1616, %v1612
    %v1618 = vmul.f32 1.0, %v1617
    %v1619 = vmul.f32 %v1559, %v1588
    %v1620 = vmul.f32 %v1560, %v1603
    %v1621 = vmul.f32 %v1561, %v1618
    %1622 = vst [vmem:[#allocation10] sm:$0xff] %v1553
    %1623 = vst [vmem:[#allocation10 + $0x8] sm:$0xff] %v1554
    %s1624 = scalar_lea.vmem [#allocation10], 16
    %1625 = vst [vmem:[%s1624 - $0x2] sm:$0xfc] %v1619
    %1626 = vst [vmem:[%s1624 + $0x6] sm:$0xff] %v1620
    %1627 = vst [vmem:[%s1624 + $0xe] sm:$0x3] %v1621
    // Predicated region
    $region50: #{tpu_custom_call.1} parent=1 // pred_check
      _
    $region51: #{tpu_custom_call.1} parent=1 // pred_check_branch
      %1629 = sbr.rel (0) target = $region53
    $region52: #{tpu_custom_call.1} parent=1 // pred_region
      %1631 = vsyncadd [#allocation6], 0
      %s1632 = sshll.u32 [#allocation10], 4
      %s1633 = int_to_ptr.vmem [resolvable:$true] %s1632
      %s1634 = sshll.u32 %s9, 4
      %s1635 = int_to_ptr.hbm [resolvable:$true] %s1634
      %1640 = dma.vmem_to_hbm [thread:$0]  %s1633, 512, %s1635, [#allocation6], 128, 128, 8
    $region53: #{tpu_custom_call.1} parent=1 // pred_fallthru
      _
    // Predicated region
    $region54: #{tpu_custom_call.1} parent=1 // pred_check
      _
    $region55: #{tpu_custom_call.1} parent=1 // pred_check_branch
      %1642 = sbr.rel (0) target = $region57
    $region56: #{tpu_custom_call.1} parent=1 // pred_region
      %1644 = dma.done [#allocation6], 512
    $region57: #{tpu_custom_call.1} parent=1 // pred_fallthru
      _
    %1645 = vsyncpa [#allocation5], 1
    %1646 = vsyncpa [#allocation8], 1
    %1647 = vsyncpa [#allocation6], 1

</llo_original>
